<compile_context>
chip_gen: v7x
topology: tpu7x:2x2x1
jax: 0.10.0
libtpu: 0.0.40
codegen_flags: <defaults>
</compile_context>

<pallas_src>
import math
import functools

import jax
import jax.numpy as jnp
from jax.experimental import pallas as pl
from jax.experimental.pallas import tpu as pltpu


def _mha_flash_kernel(q_ref, k_ref, v_ref, w_in_ref, b_in_ref, w_out_ref,
                      b_out_ref, out_ref, *rest, num_heads, need_weights):
    # q_ref: (B, TL, E) bf16       k_ref / v_ref: (B, TS, E) bf16
    # w_in_ref: (3, E, E) bf16 (each [i] = W_i^T, scaling folded into [0])
    # b_in_ref: (3, 1, E) f32 (scaling folded into [0])
    # w_out_ref: (E, E) bf16 (W_o^T)      b_out_ref: (1, E) f32
    # out_ref: (B, TL, E)           attn_ref (optional): (B, TL, S)
    # scratch: q_sc (G, TL, D) bf16, m_sc/l_sc (G, TL, 1) f32, acc_sc (G, TL, D) f32
    if need_weights:
        attn_ref = rest[0]
        q_sc, m_sc, l_sc, acc_sc = rest[1:]
    else:
        attn_ref = None
        q_sc, m_sc, l_sc, acc_sc = rest

    B, TL, E = q_ref.shape
    TS = k_ref.shape[1]
    H = num_heads
    D = E // H
    G = H * B                       # fused (head, batch) leading axis, h-major

    s_idx = pl.program_id(2)
    ns = pl.num_programs(2)

    # ---- init accumulators + project Q once per (batch-block, L-tile) ----
    @pl.when(s_idx == 0)
    def _init():
        m_sc[...] = jnp.full_like(m_sc, -jnp.inf)
        l_sc[...] = jnp.zeros_like(l_sc)
        acc_sc[...] = jnp.zeros_like(acc_sc)
        q_flat = q_ref[...].reshape(B * TL, E)                       # bf16
        # 1/sqrt(D) already folded into w_in_ref[0] / b_in_ref[0]
        q = jnp.dot(q_flat, w_in_ref[0],
                    preferred_element_type=jnp.float32) + b_in_ref[0]
        q = q.astype(q_sc.dtype)                 # cast BEFORE the relayout
        q_sc[...] = q.reshape(B * TL, H, D).transpose(1, 0, 2).reshape(G, TL, D)

    # ---- project this K/V tile (every S step), head-split in bf16 ----
    k_flat = k_ref[...].reshape(B * TS, E)
    v_flat = v_ref[...].reshape(B * TS, E)
    k = jnp.dot(k_flat, w_in_ref[1],
                preferred_element_type=jnp.float32) + b_in_ref[1]
    v = jnp.dot(v_flat, w_in_ref[2],
                preferred_element_type=jnp.float32) + b_in_ref[2]
    k3 = k.astype(jnp.bfloat16).reshape(B * TS, H, D).transpose(1, 0, 2)
    k3 = k3.reshape(G, TS, D)
    v3 = v.astype(jnp.bfloat16).reshape(B * TS, H, D).transpose(1, 0, 2)
    v3 = v3.reshape(G, TS, D)

    # ---- scores + online softmax update (all f32 elementwise math) ----
    q3 = q_sc[...]                                                    # (G, TL, D)
    s = jnp.einsum('gld,gsd->gls', q3, k3,
                   preferred_element_type=jnp.float32)                # (G, TL, TS)

    m_prev = m_sc[...]
    m_new = jnp.maximum(m_prev, jnp.max(s, axis=-1, keepdims=True))
    alpha = jnp.exp(m_prev - m_new)
    p = jnp.exp(s - m_new)                                            # (G, TL, TS)
    l_sc[...] = alpha * l_sc[...] + jnp.sum(p, axis=-1, keepdims=True)
    acc_sc[...] = alpha * acc_sc[...] + jnp.einsum(
        'gls,gsd->gld', p.astype(jnp.bfloat16), v3,
        preferred_element_type=jnp.float32)
    m_sc[...] = m_new

    # ---- finalize: normalize once (H*L*D work), concat heads, out-proj ----
    @pl.when(s_idx == ns - 1)
    def _finalize():
        if need_weights:
            inv_l = 1.0 / l_sc[...]          # exact so weight rows sum to 1
        else:
            inv_l = pl.reciprocal(l_sc[...], approx=True)
        o = acc_sc[...] * inv_l                                       # (G, TL, D)
        o4 = o.astype(jnp.bfloat16).reshape(H, B, TL, D)
        parts = []
        for b in range(B):
            parts.append(o4[:, b].transpose(1, 0, 2).reshape(TL, E))
        o_cat = jnp.concatenate(parts, axis=0)                        # (B*TL, E)
        out = jnp.dot(o_cat, w_out_ref[...],
                      preferred_element_type=jnp.float32) + b_out_ref[...]
        out_ref[...] = out.reshape(B, TL, E).astype(out_ref.dtype)

        if need_weights:
            # wrapper guarantees ns == 1 here, so p covers the whole S row
            pw = p * inv_l                                            # normalized
            w_avg = jnp.sum(pw.reshape(H, B, TL, TS), axis=0) * (1.0 / H)
            attn_ref[...] = w_avg.astype(attn_ref.dtype)


def _pick_block(total, target, quantum):
    """Largest divisor of `total` that is <= target and % quantum == 0.
    Falls back to `total` (full extent, always legal for BlockSpec)."""
    if total <= target:
        return total
    for cand in range(target, 0, -1):
        if total % cand == 0 and cand % quantum == 0:
            return cand
    return total


def multihead_attention(query, key, value, w_in, b_in, w_out, b_out, num_heads,
                        need_weights=True, *, batch_block=None, l_block=None,
                        s_block=None, out_dtype=jnp.bfloat16):
    """query: (L, N, E); key/value: (S, N, E).

    Returns (attn_output (L, N, E), attn_weights (N, L, S) or None), matching
    F.multi_head_attention_forward (eval, no masks, dropout=0).  Compute is
    bf16 on the MXU with f32 accumulation; outputs are `out_dtype` (bf16 by
    default).  need_weights=False is the fast (flash-tiled-over-S) path.
    """
    L, N, E = query.shape
    S = key.shape[0]
    H = num_heads
    assert E % H == 0, "embed_dim must be divisible by num_heads"
    D = E // H
    cdt = jnp.bfloat16

    # ---- batch-major activations ----
    q_b = jnp.transpose(query, (1, 0, 2)).astype(cdt)          # (N, L, E)
    k_b = jnp.transpose(key, (1, 0, 2)).astype(cdt)            # (N, S, E)
    v_b = jnp.transpose(value, (1, 0, 2)).astype(cdt)          # (N, S, E)

    # ---- weights: pre-transposed, q scaling folded in ----
    scaling = 1.0 / math.sqrt(D)
    w_in3 = w_in.astype(jnp.float32).reshape(3, E, E)
    w_in3 = w_in3.at[0].multiply(scaling)
    b_in3 = b_in.astype(jnp.float32).reshape(3, 1, E)
    b_in3 = b_in3.at[0].multiply(scaling)
    w_in_t = jnp.transpose(w_in3, (0, 2, 1)).astype(cdt)       # (3, E, E)
    w_out_t = jnp.transpose(w_out, (1, 0)).astype(cdt)         # (E, E)
    b_out2 = b_out.astype(jnp.float32).reshape(1, E)           # (1, E)

    # ---- tiling ----
    TL = l_block if l_block is not None else _pick_block(L, 256, 8)
    if need_weights:
        TS = S     # full prob row needed to emit normalized attention weights
    else:
        TS = s_block if s_block is not None else _pick_block(S, 512, 8)
    max_bb = max(1, 256 // max(TL, 1))
    B = batch_block if batch_block is not None else _pick_block(N, max_bb, 1)
    assert L % TL == 0 and S % TS == 0 and N % B == 0
    nb, nl, ns = N // B, L // TL, S // TS
    G = H * B

    def _const_spec(shape):
        # constant index_map -> single-buffer (no point double-buffering weights)
        return pl.BlockSpec(shape, lambda b, l, s: (0,) * len(shape),
                            pipeline_mode=pl.Buffered(1))

    in_specs = [
        pl.BlockSpec((B, TL, E), lambda b, l, s: (b, l, 0)),    # query
        pl.BlockSpec((B, TS, E), lambda b, l, s: (b, s, 0)),    # key
        pl.BlockSpec((B, TS, E), lambda b, l, s: (b, s, 0)),    # value
        _const_spec((3, E, E)),                                 # in-proj weights
        _const_spec((3, 1, E)),                                 # in-proj biases
        _const_spec((E, E)),                                    # out-proj weight
        _const_spec((1, E)),                                    # out-proj bias
    ]

    out_shapes = [jax.ShapeDtypeStruct((N, L, E), out_dtype)]
    out_specs = [pl.BlockSpec((B, TL, E), lambda b, l, s: (b, l, 0))]
    if need_weights:
        out_shapes.append(jax.ShapeDtypeStruct((N, L, S), out_dtype))
        out_specs.append(pl.BlockSpec((B, TL, S), lambda b, l, s: (b, l, 0)))

    scratch_shapes = [
        pltpu.VMEM((G, TL, D), cdt),           # projected head-split Q
        pltpu.VMEM((G, TL, 1), jnp.float32),   # running max   (online softmax)
        pltpu.VMEM((G, TL, 1), jnp.float32),   # running denom (online softmax)
        pltpu.VMEM((G, TL, D), jnp.float32),   # running output accumulator
    ]

    kernel = functools.partial(_mha_flash_kernel, num_heads=H,
                               need_weights=need_weights)
    results = pl.pallas_call(
        kernel,
        out_shape=tuple(out_shapes),
        grid=(nb, nl, ns),
        in_specs=in_specs,
        out_specs=tuple(out_specs),
        scratch_shapes=scratch_shapes,
        compiler_params=pltpu.CompilerParams(
            dimension_semantics=("parallel", "parallel", "arbitrary"),
            vmem_limit_bytes=48 * 1024 * 1024),
    )(q_b, k_b, v_b, w_in_t, b_in3, w_out_t, b_out2)

    attn_out = jnp.transpose(results[0], (1, 0, 2))             # (L, N, E)
    if need_weights:
        return attn_out, results[1]
    return attn_out, None


def _reference_mha(query, key, value, w_in, b_in, w_out, b_out, num_heads):
    """Pure-JAX f32 replica of F.multi_head_attention_forward (default path)."""
    L, N, E = query.shape
    S = key.shape[0]
    D = E // num_heads
    scaling = D ** -0.5
    q = query @ w_in[:E].T + b_in[:E]
    k = key @ w_in[E:2 * E].T + b_in[E:2 * E]
    v = value @ w_in[2 * E:].T + b_in[2 * E:]
    q = q * scaling
    q = q.reshape(L, N * num_heads, D).transpose(1, 0, 2)
    k = k.reshape(S, N * num_heads, D).transpose(1, 0, 2)
    v = v.reshape(S, N * num_heads, D).transpose(1, 0, 2)
    w = jnp.einsum('bld,bsd->bls', q, k)
    w = jax.nn.softmax(w, axis=-1)
    o = jnp.einsum('bls,bsd->bld', w, v)
    o = o.transpose(1, 0, 2).reshape(L, N, E)
    o = o @ w_out.T + b_out
    aw = w.reshape(N, num_heads, L, S).sum(axis=1) / num_heads
    return o, aw


if __name__ == "__main__":
    key0 = jax.random.PRNGKey(0)
    kw1, kw2, kq, kk, kv = jax.random.split(key0, 5)

    # ------- test 1: default need_weights=True path (small DuMA-like shapes) -------
    L, S, N, E, H = 8, 8, 2, 32, 4
    bound = math.sqrt(6.0 / (E + E))            # xavier-uniform-style init
    w_in = jax.random.uniform(kw1, (3 * E, E), jnp.float32, -bound, bound)
    b_in = jnp.zeros((3 * E,), jnp.float32)
    w_out = jax.random.uniform(kw2, (E, E), jnp.float32, -bound, bound)
    b_out = jnp.zeros((E,), jnp.float32)
    query = jax.random.normal(kq, (L, N, E), jnp.float32)
    key_t = jax.random.normal(kk, (S, N, E), jnp.float32)
    value = jax.random.normal(kv, (S, N, E), jnp.float32)

    attn_out, attn_w = multihead_attention(query, key_t, value, w_in, b_in,
                                           w_out, b_out, H, need_weights=True)
    attn_out = jax.block_until_ready(attn_out)
    attn_w = jax.block_until_ready(attn_w)

    ref_out, ref_w = _reference_mha(query, key_t, value, w_in, b_in, w_out,
                                    b_out, H)
    assert attn_out.shape == (L, N, E)
    assert attn_w.shape == (N, L, S)
    # bf16 matmuls / bf16 outputs with f32 accumulation -> relaxed tolerances.
    assert jnp.allclose(attn_out.astype(jnp.float32), ref_out,
                        atol=5e-2, rtol=5e-2)
    assert jnp.allclose(attn_w.astype(jnp.float32), ref_w,
                        atol=2e-2, rtol=2e-2)

    # ------- test 2: need_weights=False fast path; exercises S-tiled online -------
    # ------- softmax, L tiling and batch blocking (grid = 2 x 2 x 2).       -------
    L2, S2, N2 = 16, 32, 4
    q2 = jax.random.normal(jax.random.PRNGKey(1), (L2, N2, E), jnp.float32)
    k2 = jax.random.normal(jax.random.PRNGKey(2), (S2, N2, E), jnp.float32)
    v2 = jax.random.normal(jax.random.PRNGKey(3), (S2, N2, E), jnp.float32)
    out2, none_w = multihead_attention(q2, k2, v2, w_in, b_in, w_out, b_out, H,
                                       need_weights=False,
                                       batch_block=2, l_block=8, s_block=16)
    out2 = jax.block_until_ready(out2)
    ref_out2, _ = _reference_mha(q2, k2, v2, w_in, b_in, w_out, b_out, H)
    assert none_w is None
    assert out2.shape == (L2, N2, E)
    assert jnp.allclose(out2.astype(jnp.float32), ref_out2,
                        atol=5e-2, rtol=5e-2)

    print("KERNEL_OK")
</pallas_src>

<mosaic_0001>
module attributes {stable_mosaic.version = 11 : i64} {
  func.func @_mha_flash_kernel(%arg0: i32, %arg1: i32, %arg2: i32, %arg3: memref<2x8x32xbf16, #tpu.memory_space<vmem>>, %arg4: memref<2x8x32xbf16, #tpu.memory_space<vmem>>, %arg5: memref<2x8x32xbf16, #tpu.memory_space<vmem>>, %arg6: memref<3x32x32xbf16, #tpu.memory_space<vmem>>, %arg7: memref<3x1x32xf32, #tpu.memory_space<vmem>>, %arg8: memref<32x32xbf16, #tpu.memory_space<vmem>>, %arg9: memref<1x32xf32, #tpu.memory_space<vmem>>, %arg10: memref<2x8x32xbf16, #tpu.memory_space<vmem>>, %arg11: memref<2x8x8xbf16, #tpu.memory_space<vmem>>, %arg12: memref<8x8x8xbf16, #tpu.memory_space<vmem>>, %arg13: memref<8x8x1xf32, #tpu.memory_space<vmem>>, %arg14: memref<8x8x1xf32, #tpu.memory_space<vmem>>, %arg15: memref<8x8x8xf32, #tpu.memory_space<vmem>>) attributes {dimension_semantics = [#tpu.dimension_semantics<parallel>, #tpu.dimension_semantics<parallel>, #tpu.dimension_semantics<arbitrary>], iteration_bounds = array<i64: 1, 1, 1>, scalar_prefetch = 0 : i64, scratch_operands = 4 : i64, tpu.core_type = #tpu.core_type<tc>, window_params = [{transform_indices = @transform_0, window_bounds = array<i64: 2, 8, 32>}, {transform_indices = @transform_1, window_bounds = array<i64: 2, 8, 32>}, {transform_indices = @transform_2, window_bounds = array<i64: 2, 8, 32>}, {pipeline_mode = #tpu.pipeline_mode<synchronous>, transform_indices = @transform_3, window_bounds = array<i64: 3, 32, 32>}, {pipeline_mode = #tpu.pipeline_mode<synchronous>, transform_indices = @transform_4, window_bounds = array<i64: 3, 1, 32>}, {pipeline_mode = #tpu.pipeline_mode<synchronous>, transform_indices = @transform_5, window_bounds = array<i64: 32, 32>}, {pipeline_mode = #tpu.pipeline_mode<synchronous>, transform_indices = @transform_6, window_bounds = array<i64: 1, 32>}, {transform_indices = @transform_7, window_bounds = array<i64: 2, 8, 32>}, {transform_indices = @transform_8, window_bounds = array<i64: 2, 8, 8>}]} {
    %c0_i32 = arith.constant 0 : i32
    %0 = arith.cmpi eq, %arg2, %c0_i32 : i32
    %1 = arith.extui %0 : i1 to i32
    %c0_i32_0 = arith.constant 0 : i32
    %2 = arith.cmpi ne, %1, %c0_i32_0 : i32
    scf.if %2 {
      %cst_44 = arith.constant 0xFF800000 : f32
      %57 = vector.broadcast %cst_44 : f32 to vector<8x8x1xf32>
      %c0_45 = arith.constant 0 : index
      %c0_46 = arith.constant 0 : index
      %c0_47 = arith.constant 0 : index
      %58 = vector.load %arg13[%c0_45, %c0_46, %c0_47] : memref<8x8x1xf32, #tpu.memory_space<vmem>>, vector<8x8x1xf32>
      tpu.vector_store %arg13[%c0_45, %c0_46, %c0_47], %57 {strides = array<i32>} : memref<8x8x1xf32, #tpu.memory_space<vmem>>, vector<8x8x1xf32>,
      %cst_48 = arith.constant 0.000000e+00 : f32
      %59 = vector.broadcast %cst_48 : f32 to vector<8x8x1xf32>
      %c0_49 = arith.constant 0 : index
      %c0_50 = arith.constant 0 : index
      %c0_51 = arith.constant 0 : index
      %60 = vector.load %arg14[%c0_49, %c0_50, %c0_51] : memref<8x8x1xf32, #tpu.memory_space<vmem>>, vector<8x8x1xf32>
      tpu.vector_store %arg14[%c0_49, %c0_50, %c0_51], %59 {strides = array<i32>} : memref<8x8x1xf32, #tpu.memory_space<vmem>>, vector<8x8x1xf32>,
      %cst_52 = arith.constant 0.000000e+00 : f32
      %61 = vector.broadcast %cst_52 : f32 to vector<8x8x8xf32>
      %c0_53 = arith.constant 0 : index
      %c0_54 = arith.constant 0 : index
      %c0_55 = arith.constant 0 : index
      %62 = vector.load %arg15[%c0_53, %c0_54, %c0_55] : memref<8x8x8xf32, #tpu.memory_space<vmem>>, vector<8x8x8xf32>
      tpu.vector_store %arg15[%c0_53, %c0_54, %c0_55], %61 {strides = array<i32>} : memref<8x8x8xf32, #tpu.memory_space<vmem>>, vector<8x8x8xf32>,
      %c0_56 = arith.constant 0 : index
      %c0_57 = arith.constant 0 : index
      %c0_58 = arith.constant 0 : index
      %63 = vector.load %arg3[%c0_56, %c0_57, %c0_58] : memref<2x8x32xbf16, #tpu.memory_space<vmem>>, vector<2x8x32xbf16>
      %64 = vector.shape_cast %63 : vector<2x8x32xbf16> to vector<16x32xbf16>
      %c0_59 = arith.constant 0 : index
      %c0_60 = arith.constant 0 : index
      %c0_61 = arith.constant 0 : index
      %65 = vector.load %arg6[%c0_59, %c0_60, %c0_61] : memref<3x32x32xbf16, #tpu.memory_space<vmem>>, vector<1x32x32xbf16>
      %66 = vector.shape_cast %65 : vector<1x32x32xbf16> to vector<32x32xbf16>
      %cst_62 = arith.constant dense<0.000000e+00> : vector<16x32xf32>
      %67 = tpu.matmul %64, %66, %cst_62 {dimension_numbers = #tpu.dot_dimension_numbers<[1], [0], [0], [1], [0, 0, 1, 1], [], []>} : vector<16x32xbf16>, vector<32x32xbf16>, vector<16x32xf32> -> vector<16x32xf32>
      %c0_63 = arith.constant 0 : index
      %c0_64 = arith.constant 0 : index
      %c0_65 = arith.constant 0 : index
      %68 = vector.load %arg7[%c0_63, %c0_64, %c0_65] : memref<3x1x32xf32, #tpu.memory_space<vmem>>, vector<1x1x32xf32>
      %69 = vector.shape_cast %68 : vector<1x1x32xf32> to vector<1x32xf32>
      %70 = vector.broadcast %69 : vector<1x32xf32> to vector<16x32xf32>
      %71 = arith.addf %67, %70 : vector<16x32xf32>
      %72 = arith.truncf %71 : vector<16x32xf32> to vector<16x32xbf16>
      %73 = vector.shape_cast %72 : vector<16x32xbf16> to vector<16x4x8xbf16>
      %74 = tpu.transpose %73, [1, 0, 2] : vector<16x4x8xbf16> -> vector<4x16x8xbf16>
      %75 = vector.shape_cast %74 : vector<4x16x8xbf16> to vector<8x8x8xbf16>
      %c0_66 = arith.constant 0 : index
      %c0_67 = arith.constant 0 : index
      %c0_68 = arith.constant 0 : index
      %76 = vector.load %arg12[%c0_66, %c0_67, %c0_68] : memref<8x8x8xbf16, #tpu.memory_space<vmem>>, vector<8x8x8xbf16>
      tpu.vector_store %arg12[%c0_66, %c0_67, %c0_68], %75 {strides = array<i32>} : memref<8x8x8xbf16, #tpu.memory_space<vmem>>, vector<8x8x8xbf16>,
    } else {
    }
    %c0 = arith.constant 0 : index
    %c0_1 = arith.constant 0 : index
    %c0_2 = arith.constant 0 : index
    %3 = vector.load %arg4[%c0, %c0_1, %c0_2] : memref<2x8x32xbf16, #tpu.memory_space<vmem>>, vector<2x8x32xbf16>
    %4 = vector.shape_cast %3 : vector<2x8x32xbf16> to vector<16x32xbf16>
    %c0_3 = arith.constant 0 : index
    %c0_4 = arith.constant 0 : index
    %c0_5 = arith.constant 0 : index
    %5 = vector.load %arg5[%c0_3, %c0_4, %c0_5] : memref<2x8x32xbf16, #tpu.memory_space<vmem>>, vector<2x8x32xbf16>
    %6 = vector.shape_cast %5 : vector<2x8x32xbf16> to vector<16x32xbf16>
    %c1 = arith.constant 1 : index
    %c0_6 = arith.constant 0 : index
    %c0_7 = arith.constant 0 : index
    %7 = vector.load %arg6[%c1, %c0_6, %c0_7] : memref<3x32x32xbf16, #tpu.memory_space<vmem>>, vector<1x32x32xbf16>
    %8 = vector.shape_cast %7 : vector<1x32x32xbf16> to vector<32x32xbf16>
    %cst = arith.constant dense<0.000000e+00> : vector<16x32xf32>
    %9 = tpu.matmul %4, %8, %cst {dimension_numbers = #tpu.dot_dimension_numbers<[1], [0], [0], [1], [0, 0, 1, 1], [], []>} : vector<16x32xbf16>, vector<32x32xbf16>, vector<16x32xf32> -> vector<16x32xf32>
    %c1_8 = arith.constant 1 : index
    %c0_9 = arith.constant 0 : index
    %c0_10 = arith.constant 0 : index
    %10 = vector.load %arg7[%c1_8, %c0_9, %c0_10] : memref<3x1x32xf32, #tpu.memory_space<vmem>>, vector<1x1x32xf32>
    %11 = vector.shape_cast %10 : vector<1x1x32xf32> to vector<1x32xf32>
    %12 = vector.broadcast %11 : vector<1x32xf32> to vector<16x32xf32>
    %13 = arith.addf %9, %12 : vector<16x32xf32>
    %c2 = arith.constant 2 : index
    %c0_11 = arith.constant 0 : index
    %c0_12 = arith.constant 0 : index
    %14 = vector.load %arg6[%c2, %c0_11, %c0_12] : memref<3x32x32xbf16, #tpu.memory_space<vmem>>, vector<1x32x32xbf16>
    %15 = vector.shape_cast %14 : vector<1x32x32xbf16> to vector<32x32xbf16>
    %cst_13 = arith.constant dense<0.000000e+00> : vector<16x32xf32>
    %16 = tpu.matmul %6, %15, %cst_13 {dimension_numbers = #tpu.dot_dimension_numbers<[1], [0], [0], [1], [0, 0, 1, 1], [], []>} : vector<16x32xbf16>, vector<32x32xbf16>, vector<16x32xf32> -> vector<16x32xf32>
    %c2_14 = arith.constant 2 : index
    %c0_15 = arith.constant 0 : index
    %c0_16 = arith.constant 0 : index
    %17 = vector.load %arg7[%c2_14, %c0_15, %c0_16] : memref<3x1x32xf32, #tpu.memory_space<vmem>>, vector<1x1x32xf32>
    %18 = vector.shape_cast %17 : vector<1x1x32xf32> to vector<1x32xf32>
    %19 = vector.broadcast %18 : vector<1x32xf32> to vector<16x32xf32>
    %20 = arith.addf %16, %19 : vector<16x32xf32>
    %21 = arith.truncf %13 : vector<16x32xf32> to vector<16x32xbf16>
    %22 = vector.shape_cast %21 : vector<16x32xbf16> to vector<16x4x8xbf16>
    %23 = tpu.transpose %22, [1, 0, 2] : vector<16x4x8xbf16> -> vector<4x16x8xbf16>
    %24 = vector.shape_cast %23 : vector<4x16x8xbf16> to vector<8x8x8xbf16>
    %25 = arith.truncf %20 : vector<16x32xf32> to vector<16x32xbf16>
    %26 = vector.shape_cast %25 : vector<16x32xbf16> to vector<16x4x8xbf16>
    %27 = tpu.transpose %26, [1, 0, 2] : vector<16x4x8xbf16> -> vector<4x16x8xbf16>
    %28 = vector.shape_cast %27 : vector<4x16x8xbf16> to vector<8x8x8xbf16>
    %c0_17 = arith.constant 0 : index
    %c0_18 = arith.constant 0 : index
    %c0_19 = arith.constant 0 : index
    %29 = vector.load %arg12[%c0_17, %c0_18, %c0_19] : memref<8x8x8xbf16, #tpu.memory_space<vmem>>, vector<8x8x8xbf16>
    "tpu.trace_start"() <{level = 10 : i32, message = "gld,gsd->gls"}> : () -> ()
    %cst_20 = arith.constant dense<0.000000e+00> : vector<8x8x8xf32>
    %30 = tpu.matmul %29, %24, %cst_20 {dimension_numbers = #tpu.dot_dimension_numbers<[2], [2], [1], [1], [0, 0, 0, 1, 1, 1], [0], [0]>} : vector<8x8x8xbf16>, vector<8x8x8xbf16>, vector<8x8x8xf32> -> vector<8x8x8xf32>
    "tpu.trace_stop"() : () -> ()
    %c0_21 = arith.constant 0 : index
    %c0_22 = arith.constant 0 : index
    %c0_23 = arith.constant 0 : index
    %31 = vector.load %arg13[%c0_21, %c0_22, %c0_23] : memref<8x8x1xf32, #tpu.memory_space<vmem>>, vector<8x8x1xf32>
    %cst_24 = arith.constant dense<0xFF800000> : vector<8x8xf32>
    %32 = vector.multi_reduction <maximumf>, %30, %cst_24 [2] : vector<8x8x8xf32> to vector<8x8xf32>
    %33 = vector.shape_cast %32 : vector<8x8xf32> to vector<8x8x1xf32>
    %34 = arith.maximumf %31, %33 : vector<8x8x1xf32>
    %35 = arith.subf %31, %34 : vector<8x8x1xf32>
    %36 = math.exp %35 : vector<8x8x1xf32>
    %37 = vector.broadcast %34 : vector<8x8x1xf32> to vector<8x8x8xf32>
    %38 = arith.subf %30, %37 : vector<8x8x8xf32>
    %39 = math.exp %38 : vector<8x8x8xf32>
    %c0_25 = arith.constant 0 : index
    %c0_26 = arith.constant 0 : index
    %c0_27 = arith.constant 0 : index
    %40 = vector.load %arg14[%c0_25, %c0_26, %c0_27] : memref<8x8x1xf32, #tpu.memory_space<vmem>>, vector<8x8x1xf32>
    %41 = arith.mulf %36, %40 : vector<8x8x1xf32>
    %cst_28 = arith.constant dense<0.000000e+00> : vector<8x8xf32>
    %42 = vector.multi_reduction <add>, %39, %cst_28 [2] : vector<8x8x8xf32> to vector<8x8xf32>
    %43 = vector.shape_cast %42 : vector<8x8xf32> to vector<8x8x1xf32>
    %44 = arith.addf %41, %43 : vector<8x8x1xf32>
    %c0_29 = arith.constant 0 : index
    %c0_30 = arith.constant 0 : index
    %c0_31 = arith.constant 0 : index
    %45 = vector.load %arg14[%c0_29, %c0_30, %c0_31] : memref<8x8x1xf32, #tpu.memory_space<vmem>>, vector<8x8x1xf32>
    tpu.vector_store %arg14[%c0_29, %c0_30, %c0_31], %44 {strides = array<i32>} : memref<8x8x1xf32, #tpu.memory_space<vmem>>, vector<8x8x1xf32>,
    %c0_32 = arith.constant 0 : index
    %c0_33 = arith.constant 0 : index
    %c0_34 = arith.constant 0 : index
    %46 = vector.load %arg15[%c0_32, %c0_33, %c0_34] : memref<8x8x8xf32, #tpu.memory_space<vmem>>, vector<8x8x8xf32>
    %47 = vector.broadcast %36 : vector<8x8x1xf32> to vector<8x8x8xf32>
    %48 = arith.mulf %47, %46 : vector<8x8x8xf32>
    %49 = arith.truncf %39 : vector<8x8x8xf32> to vector<8x8x8xbf16>
    "tpu.trace_start"() <{level = 10 : i32, message = "gls,gsd->gld"}> : () -> ()
    %cst_35 = arith.constant dense<0.000000e+00> : vector<8x8x8xf32>
    %50 = tpu.matmul %49, %28, %cst_35 {dimension_numbers = #tpu.dot_dimension_numbers<[2], [1], [1], [2], [0, 0, 0, 1, 1, 2], [0], [0]>} : vector<8x8x8xbf16>, vector<8x8x8xbf16>, vector<8x8x8xf32> -> vector<8x8x8xf32>
    "tpu.trace_stop"() : () -> ()
    %51 = arith.addf %48, %50 : vector<8x8x8xf32>
    %c0_36 = arith.constant 0 : index
    %c0_37 = arith.constant 0 : index
    %c0_38 = arith.constant 0 : index
    %52 = vector.load %arg15[%c0_36, %c0_37, %c0_38] : memref<8x8x8xf32, #tpu.memory_space<vmem>>, vector<8x8x8xf32>
    tpu.vector_store %arg15[%c0_36, %c0_37, %c0_38], %51 {strides = array<i32>} : memref<8x8x8xf32, #tpu.memory_space<vmem>>, vector<8x8x8xf32>,
    %c0_39 = arith.constant 0 : index
    %c0_40 = arith.constant 0 : index
    %c0_41 = arith.constant 0 : index
    %53 = vector.load %arg13[%c0_39, %c0_40, %c0_41] : memref<8x8x1xf32, #tpu.memory_space<vmem>>, vector<8x8x1xf32>
    tpu.vector_store %arg13[%c0_39, %c0_40, %c0_41], %34 {strides = array<i32>} : memref<8x8x1xf32, #tpu.memory_space<vmem>>, vector<8x8x1xf32>,
    %c0_i32_42 = arith.constant 0 : i32
    %54 = arith.cmpi eq, %arg2, %c0_i32_42 : i32
    %55 = arith.extui %54 : i1 to i32
    %c0_i32_43 = arith.constant 0 : i32
    %56 = arith.cmpi ne, %55, %c0_i32_43 : i32
    scf.if %56 {
      %c0_44 = arith.constant 0 : index
      %c0_45 = arith.constant 0 : index
      %c0_46 = arith.constant 0 : index
      %57 = vector.load %arg14[%c0_44, %c0_45, %c0_46] : memref<8x8x1xf32, #tpu.memory_space<vmem>>, vector<8x8x1xf32>
      %cst_47 = arith.constant 1.000000e+00 : f32
      %58 = vector.broadcast %cst_47 : f32 to vector<8x8x1xf32>
      %59 = arith.divf %58, %57 : vector<8x8x1xf32>
      %c0_48 = arith.constant 0 : index
      %c0_49 = arith.constant 0 : index
      %c0_50 = arith.constant 0 : index
      %60 = vector.load %arg15[%c0_48, %c0_49, %c0_50] : memref<8x8x8xf32, #tpu.memory_space<vmem>>, vector<8x8x8xf32>
      %61 = vector.broadcast %59 : vector<8x8x1xf32> to vector<8x8x8xf32>
      %62 = arith.mulf %60, %61 : vector<8x8x8xf32>
      %63 = arith.truncf %62 : vector<8x8x8xf32> to vector<8x8x8xbf16>
      %64 = vector.shape_cast %63 : vector<8x8x8xbf16> to vector<4x2x8x8xbf16>
      %65 = vector.extract_strided_slice %64 {offsets = [0, 0, 0, 0], sizes = [4, 1, 8, 8], strides = [1, 1, 1, 1]} : vector<4x2x8x8xbf16> to vector<4x1x8x8xbf16>
      %66 = vector.shape_cast %65 : vector<4x1x8x8xbf16> to vector<4x8x8xbf16>
      %67 = tpu.transpose %66, [1, 0, 2] : vector<4x8x8xbf16> -> vector<8x4x8xbf16>
      %68 = vector.shape_cast %67 : vector<8x4x8xbf16> to vector<8x32xbf16>
      %69 = vector.extract_strided_slice %64 {offsets = [0, 1, 0, 0], sizes = [4, 1, 8, 8], strides = [1, 1, 1, 1]} : vector<4x2x8x8xbf16> to vector<4x1x8x8xbf16>
      %70 = vector.shape_cast %69 : vector<4x1x8x8xbf16> to vector<4x8x8xbf16>
      %71 = tpu.transpose %70, [1, 0, 2] : vector<4x8x8xbf16> -> vector<8x4x8xbf16>
      %72 = vector.shape_cast %71 : vector<8x4x8xbf16> to vector<8x32xbf16>
      %73 = tpu.concatenate %68, %72 in 0 : vector<8x32xbf16>, vector<8x32xbf16> -> vector<16x32xbf16>
      %c0_51 = arith.constant 0 : index
      %c0_52 = arith.constant 0 : index
      %74 = vector.load %arg8[%c0_51, %c0_52] : memref<32x32xbf16, #tpu.memory_space<vmem>>, vector<32x32xbf16>
      %cst_53 = arith.constant dense<0.000000e+00> : vector<16x32xf32>
      %75 = tpu.matmul %73, %74, %cst_53 {dimension_numbers = #tpu.dot_dimension_numbers<[1], [0], [0], [1], [0, 0, 1, 1], [], []>} : vector<16x32xbf16>, vector<32x32xbf16>, vector<16x32xf32> -> vector<16x32xf32>
      %c0_54 = arith.constant 0 : index
      %c0_55 = arith.constant 0 : index
      %76 = vector.load %arg9[%c0_54, %c0_55] : memref<1x32xf32, #tpu.memory_space<vmem>>, vector<1x32xf32>
      %77 = vector.broadcast %76 : vector<1x32xf32> to vector<16x32xf32>
      %78 = arith.addf %75, %77 : vector<16x32xf32>
      %79 = vector.shape_cast %78 : vector<16x32xf32> to vector<2x8x32xf32>
      %80 = arith.truncf %79 : vector<2x8x32xf32> to vector<2x8x32xbf16>
      %c0_56 = arith.constant 0 : index
      %c0_57 = arith.constant 0 : index
      %c0_58 = arith.constant 0 : index
      %81 = vector.load %arg10[%c0_56, %c0_57, %c0_58] : memref<2x8x32xbf16, #tpu.memory_space<vmem>>, vector<2x8x32xbf16>
      tpu.vector_store %arg10[%c0_56, %c0_57, %c0_58], %80 {strides = array<i32>} : memref<2x8x32xbf16, #tpu.memory_space<vmem>>, vector<2x8x32xbf16>,
      %82 = vector.broadcast %59 : vector<8x8x1xf32> to vector<8x8x8xf32>
      %83 = arith.mulf %39, %82 : vector<8x8x8xf32>
      %84 = vector.shape_cast %83 : vector<8x8x8xf32> to vector<4x2x8x8xf32>
      %cst_59 = arith.constant dense<0.000000e+00> : vector<2x8x8xf32>
      %85 = vector.multi_reduction <add>, %84, %cst_59 [0] : vector<4x2x8x8xf32> to vector<2x8x8xf32>
      %cst_60 = arith.constant 2.500000e-01 : f32
      %86 = vector.broadcast %cst_60 : f32 to vector<2x8x8xf32>
      %87 = arith.mulf %85, %86 : vector<2x8x8xf32>
      %88 = arith.truncf %87 : vector<2x8x8xf32> to vector<2x8x8xbf16>
      %c0_61 = arith.constant 0 : index
      %c0_62 = arith.constant 0 : index
      %c0_63 = arith.constant 0 : index
      %89 = vector.load %arg11[%c0_61, %c0_62, %c0_63] : memref<2x8x8xbf16, #tpu.memory_space<vmem>>, vector<2x8x8xbf16>
      tpu.vector_store %arg11[%c0_61, %c0_62, %c0_63], %88 {strides = array<i32>} : memref<2x8x8xbf16, #tpu.memory_space<vmem>>, vector<2x8x8xbf16>,
    } else {
    }
    return
  }
  func.func @transform_0(%arg0: i32, %arg1: i32, %arg2: i32) -> (i32, i32, i32) {
    %c0_i32 = arith.constant 0 : i32
    %c0_i32_0 = arith.constant 0 : i32
    return %arg0, %arg1, %c0_i32 : i32, i32, i32
  }
  func.func @transform_1(%arg0: i32, %arg1: i32, %arg2: i32) -> (i32, i32, i32) {
    %c0_i32 = arith.constant 0 : i32
    %c0_i32_0 = arith.constant 0 : i32
    return %arg0, %arg2, %c0_i32 : i32, i32, i32
  }
  func.func @transform_2(%arg0: i32, %arg1: i32, %arg2: i32) -> (i32, i32, i32) {
    %c0_i32 = arith.constant 0 : i32
    %c0_i32_0 = arith.constant 0 : i32
    return %arg0, %arg2, %c0_i32 : i32, i32, i32
  }
  func.func @transform_3(%arg0: i32, %arg1: i32, %arg2: i32) -> (i32, i32, i32) {
    %c0_i32 = arith.constant 0 : i32
    %c0_i32_0 = arith.constant 0 : i32
    %c0_i32_1 = arith.constant 0 : i32
    %c0_i32_2 = arith.constant 0 : i32
    return %c0_i32, %c0_i32_0, %c0_i32_1 : i32, i32, i32
  }
  func.func @transform_4(%arg0: i32, %arg1: i32, %arg2: i32) -> (i32, i32, i32) {
    %c0_i32 = arith.constant 0 : i32
    %c0_i32_0 = arith.constant 0 : i32
    %c0_i32_1 = arith.constant 0 : i32
    %c0_i32_2 = arith.constant 0 : i32
    return %c0_i32, %c0_i32_0, %c0_i32_1 : i32, i32, i32
  }
  func.func @transform_5(%arg0: i32, %arg1: i32, %arg2: i32) -> (i32, i32) {
    %c0_i32 = arith.constant 0 : i32
    %c0_i32_0 = arith.constant 0 : i32
    %c0_i32_1 = arith.constant 0 : i32
    return %c0_i32, %c0_i32_0 : i32, i32
  }
  func.func @transform_6(%arg0: i32, %arg1: i32, %arg2: i32) -> (i32, i32) {
    %c0_i32 = arith.constant 0 : i32
    %c0_i32_0 = arith.constant 0 : i32
    %c0_i32_1 = arith.constant 0 : i32
    return %c0_i32, %c0_i32_0 : i32, i32
  }
  func.func @transform_7(%arg0: i32, %arg1: i32, %arg2: i32) -> (i32, i32, i32) {
    %c0_i32 = arith.constant 0 : i32
    %c0_i32_0 = arith.constant 0 : i32
    return %arg0, %arg1, %c0_i32 : i32, i32, i32
  }
  func.func @transform_8(%arg0: i32, %arg1: i32, %arg2: i32) -> (i32, i32, i32) {
    %c0_i32 = arith.constant 0 : i32
    %c0_i32_0 = arith.constant 0 : i32
    return %arg0, %arg1, %c0_i32 : i32, i32, i32
  }
}

</mosaic_0001>

<llo_original>
// kernel: tpu_custom_call.1
$region0: #{tpu_custom_call.1}
  #allocation0 [shape = 'u32[]', space=smem, size = 0x4, offset = 0x4, fixed_abs, tag = 'smem constant byte address 0x4 - core index']
  #allocation1 [shape = 'u32[144,128]{1,0:T(1,128)}', space=vmem, size = 0x12000, scoped, tag = 'internal scratch']
  #allocation2 [shape = 'bf16[8,8,8]{2,1,0:T(8,128)(2,1)}', space=vmem, size = 0x4000, scoped, tag = 'scratch operand']
  #allocation3 [shape = 'f32[8,8,1]{2,1,0:T(8,128)}', space=vmem, size = 0x8000, scoped, tag = 'scratch operand']
  #allocation4 [shape = 'f32[8,8,1]{2,1,0:T(8,128)}', space=vmem, size = 0x8000, scoped, tag = 'scratch operand']
  #allocation5 [shape = 'f32[8,8,8]{2,1,0:T(8,128)}', space=vmem, size = 0x8000, scoped, tag = 'scratch operand']
  %s0 = inlined_call_operand.hbm [shape: bf16[2,8,32], index: 0, kind: input, shape index: {}]
  %s1 = inlined_call_operand.hbm [shape: bf16[2,8,32], index: 1, kind: input, shape index: {}]
  %s2 = inlined_call_operand.hbm [shape: bf16[2,8,32], index: 2, kind: input, shape index: {}]
  %s3 = inlined_call_operand.hbm [shape: bf16[3,32,32], index: 3, kind: input, shape index: {}]
  %s4 = inlined_call_operand.hbm [shape: f32[3,1,32], index: 4, kind: input, shape index: {}]
  %s5 = inlined_call_operand.vmem [shape: bf16[32,32], index: 5, kind: input, shape index: {}]
  %s6 = inlined_call_operand.vmem [shape: f32[1,32], index: 6, kind: input, shape index: {}]
  %s7 = inlined_call_operand.hbm [shape: bf16[2,8,32], index: 7, kind: output, shape index: {0}]
  %s8 = inlined_call_operand.hbm [shape: bf16[2,8,8], index: 8, kind: output, shape index: {1}]
  %9 = xla_tuple %s7, %s8
  %s10 = sld [smem:[#allocation0]]
  $region74: #{tpu_custom_call.1} parent=0
    _
  %s12 = ssub.s32 1, %s10
  %s13 = scalar_select 0, %s12, %s10
  $region1: #{tpu_custom_call.1} parent=0
    #allocation6 [shape = 'u8[4096]{0}', space=vmem, size = 0x1000, scoped, tag = 'input window, operand 0, single buffered']
    #allocation7 [shape = 's32[1]{0}', space=sflag, size = 0x4, scoped, tag = 'scoped memory for tpu_custom_call.1']
    #allocation8 [shape = 's32[1]{0}', space=sflag, size = 0x4, scoped, tag = 'scoped memory for tpu_custom_call.1']
    #allocation9 [shape = 'u8[4096]{0}', space=vmem, size = 0x1000, scoped, tag = 'input window, operand 1, single buffered']
    #allocation10 [shape = 's32[1]{0}', space=sflag, size = 0x4, scoped, tag = 'scoped memory for tpu_custom_call.1']
    #allocation11 [shape = 'u8[4096]{0}', space=vmem, size = 0x1000, scoped, tag = 'input window, operand 2, single buffered']
    #allocation12 [shape = 'u8[24576]{0}', space=vmem, size = 0x6000, scoped, tag = 'input window, operand 3, single buffered']
    #allocation13 [shape = 's32[1]{0}', space=sflag, size = 0x4, scoped, tag = 'scoped memory for tpu_custom_call.1']
    #allocation14 [shape = 'u8[1536]{0}', space=vmem, size = 0x800, scoped, tag = 'input window, operand 4, single buffered']
    #allocation15 [shape = 'u8[4096]{0}', space=vmem, size = 0x1000, scoped, tag = 'output window, operand 0, single buffered']
    #allocation16 [shape = 'u8[4096]{0}', space=vmem, size = 0x1000, scoped, tag = 'output window, operand 1, single buffered']
    #allocation17 [shape = 's32[1]{0}', space=sflag, size = 0x4, scoped, tag = 'scoped memory for tpu_custom_call.1']
    %14 = vsyncpa [#allocation7], 0
    %15 = vsyncpa [#allocation10], 0
    %16 = vsyncpa [#allocation13], 0
    %17 = vsyncpa [#allocation8], 0
    %18 = vsyncpa [#allocation17], 0
    // Predicated region
    $region2: #{tpu_custom_call.1} parent=1 // pred_check
      _
    $region3: #{tpu_custom_call.1} parent=1 // pred_check_branch
      %20 = sbr.rel (0) target = $region5
    $region4: #{tpu_custom_call.1} parent=1 // pred_region
      %s22 = ssub.s32 128, 128
      %23 = vsyncadd [#allocation7], %s22
      %s24 = sshll.u32 [#allocation6], 4
      %s25 = int_to_ptr.vmem [resolvable:$true] %s24
      %30 = dma.hbm_to_vmem [thread:$0]  %s0, 128, %s25, [#allocation7], 64, 64, 4
    $region5: #{tpu_custom_call.1} parent=1 // pred_fallthru
      _
    // Predicated region
    $region6: #{tpu_custom_call.1} parent=1 // pred_check
      _
    $region7: #{tpu_custom_call.1} parent=1 // pred_check_branch
      %32 = sbr.rel (0) target = $region9
    $region8: #{tpu_custom_call.1} parent=1 // pred_region
      %s34 = ssub.s32 128, 128
      %35 = vsyncadd [#allocation10], %s34
      %s36 = sshll.u32 [#allocation9], 4
      %s37 = int_to_ptr.vmem [resolvable:$true] %s36
      %42 = dma.hbm_to_vmem [thread:$0]  %s1, 128, %s37, [#allocation10], 64, 64, 4
    $region9: #{tpu_custom_call.1} parent=1 // pred_fallthru
      _
    // Predicated region
    $region10: #{tpu_custom_call.1} parent=1 // pred_check
      _
    $region11: #{tpu_custom_call.1} parent=1 // pred_check_branch
      %44 = sbr.rel (0) target = $region13
    $region12: #{tpu_custom_call.1} parent=1 // pred_region
      %s46 = ssub.s32 128, 128
      %47 = vsyncadd [#allocation10], %s46
      %s48 = sshll.u32 [#allocation11], 4
      %s49 = int_to_ptr.vmem [resolvable:$true] %s48
      %54 = dma.hbm_to_vmem [thread:$0]  %s2, 128, %s49, [#allocation10], 64, 64, 4
    $region13: #{tpu_custom_call.1} parent=1 // pred_fallthru
      _
    // Predicated region
    $region14: #{tpu_custom_call.1} parent=1 // pred_check
      _
    $region15: #{tpu_custom_call.1} parent=1 // pred_check_branch
      %56 = sbr.rel (0) target = $region17
    $region16: #{tpu_custom_call.1} parent=1 // pred_region
      %s58 = ssub.s32 768, 768
      %59 = vsyncadd [#allocation13], %s58
      %s60 = sshll.u32 [#allocation12], 4
      %s61 = int_to_ptr.vmem [resolvable:$true] %s60
      %66 = dma.hbm_to_vmem [thread:$0]  %s3, 768, %s61, [#allocation13], 64, 64, 4
    $region17: #{tpu_custom_call.1} parent=1 // pred_fallthru
      _
    // Predicated region
    $region18: #{tpu_custom_call.1} parent=1 // pred_check
      _
    $region19: #{tpu_custom_call.1} parent=1 // pred_check_branch
      %68 = sbr.rel (0) target = $region21
    $region20: #{tpu_custom_call.1} parent=1 // pred_region
      %s70 = ssub.s32 48, 48
      %71 = vsyncadd [#allocation13], %s70
      %s72 = sshll.u32 [#allocation14], 4
      %s73 = int_to_ptr.vmem [resolvable:$true] %s72
      %78 = dma.hbm_to_vmem [thread:$0]  %s4, 48, %s73, [#allocation13], 16, 16, 1
    $region21: #{tpu_custom_call.1} parent=1 // pred_fallthru
      _
    // Predicated region
    $region22: #{tpu_custom_call.1} parent=1 // pred_check
      _
    $region23: #{tpu_custom_call.1} parent=1 // pred_check_branch
      %80 = sbr.rel (0) target = $region25
    $region24: #{tpu_custom_call.1} parent=1 // pred_region
      _
    $region25: #{tpu_custom_call.1} parent=1 // pred_fallthru
      _
    // Predicated region
    $region26: #{tpu_custom_call.1} parent=1 // pred_check
      _
    $region27: #{tpu_custom_call.1} parent=1 // pred_check_branch
      %82 = sbr.rel (0) target = $region29
    $region28: #{tpu_custom_call.1} parent=1 // pred_region
      _
    $region29: #{tpu_custom_call.1} parent=1 // pred_fallthru
      _
    // Predicated region
    $region30: #{tpu_custom_call.1} parent=1 // pred_check
      _
    $region31: #{tpu_custom_call.1} parent=1 // pred_check_branch
      %84 = sbr.rel (0) target = $region33
    $region32: #{tpu_custom_call.1} parent=1 // pred_region
      %85 = dma.done [#allocation7], 128
    $region33: #{tpu_custom_call.1} parent=1 // pred_fallthru
      _
    // Predicated region
    $region34: #{tpu_custom_call.1} parent=1 // pred_check
      _
    $region35: #{tpu_custom_call.1} parent=1 // pred_check_branch
      %87 = sbr.rel (0) target = $region37
    $region36: #{tpu_custom_call.1} parent=1 // pred_region
      %88 = dma.done [#allocation10], 128
    $region37: #{tpu_custom_call.1} parent=1 // pred_fallthru
      _
    // Predicated region
    $region38: #{tpu_custom_call.1} parent=1 // pred_check
      _
    $region39: #{tpu_custom_call.1} parent=1 // pred_check_branch
      %90 = sbr.rel (0) target = $region41
    $region40: #{tpu_custom_call.1} parent=1 // pred_region
      %91 = dma.done [#allocation10], 128
    $region41: #{tpu_custom_call.1} parent=1 // pred_fallthru
      _
    // Predicated region
    $region42: #{tpu_custom_call.1} parent=1 // pred_check
      _
    $region43: #{tpu_custom_call.1} parent=1 // pred_check_branch
      %93 = sbr.rel (0) target = $region45
    $region44: #{tpu_custom_call.1} parent=1 // pred_region
      %94 = dma.done [#allocation13], 768
    $region45: #{tpu_custom_call.1} parent=1 // pred_fallthru
      _
    // Predicated region
    $region46: #{tpu_custom_call.1} parent=1 // pred_check
      _
    $region47: #{tpu_custom_call.1} parent=1 // pred_check_branch
      %96 = sbr.rel (0) target = $region49
    $region48: #{tpu_custom_call.1} parent=1 // pred_region
      %97 = dma.done [#allocation13], 48
    $region49: #{tpu_custom_call.1} parent=1 // pred_fallthru
      _
    %p99 = scmp.eq.s32.totalorder 0, 0
    // Predicated region
    $region50: #{tpu_custom_call.1} parent=1 // pred_check
      %p100 = pneg %p99
    $region51: #{tpu_custom_call.1} parent=1 // pred_check_branch
      %102 = sbr.rel (%p100) target = $region53
    $region52: #{tpu_custom_call.1} parent=1 // pred_region
      %vm103 = vcmask 7168
      %104 = vst.msk [vmem:[#allocation3] sm:$0xff] %vm103, -inf
      %105 = vst.msk [vmem:[#allocation3 + $0x8] sm:$0xff] %vm103, -inf
      %106 = vst.msk [vmem:[#allocation3 + $0x10] sm:$0xff] %vm103, -inf
      %107 = vst.msk [vmem:[#allocation3 + $0x18] sm:$0xff] %vm103, -inf
      %108 = vst.msk [vmem:[#allocation3 + $0x20] sm:$0xff] %vm103, -inf
      %109 = vst.msk [vmem:[#allocation3 + $0x28] sm:$0xff] %vm103, -inf
      %110 = vst.msk [vmem:[#allocation3 + $0x30] sm:$0xff] %vm103, -inf
      %111 = vst.msk [vmem:[#allocation3 + $0x38] sm:$0xff] %vm103, -inf
      %112 = vst.msk [vmem:[#allocation4] sm:$0xff] %vm103, 0.0
      %113 = vst.msk [vmem:[#allocation4 + $0x8] sm:$0xff] %vm103, 0.0
      %114 = vst.msk [vmem:[#allocation4 + $0x10] sm:$0xff] %vm103, 0.0
      %115 = vst.msk [vmem:[#allocation4 + $0x18] sm:$0xff] %vm103, 0.0
      %116 = vst.msk [vmem:[#allocation4 + $0x20] sm:$0xff] %vm103, 0.0
      %117 = vst.msk [vmem:[#allocation4 + $0x28] sm:$0xff] %vm103, 0.0
      %118 = vst.msk [vmem:[#allocation4 + $0x30] sm:$0xff] %vm103, 0.0
      %119 = vst.msk [vmem:[#allocation4 + $0x38] sm:$0xff] %vm103, 0.0
      %vm120 = vcmask 64512
      %121 = vst.msk [vmem:[#allocation5] sm:$0xff] %vm120, 0.0
      %122 = vst.msk [vmem:[#allocation5 + $0x8] sm:$0xff] %vm120, 0.0
      %123 = vst.msk [vmem:[#allocation5 + $0x10] sm:$0xff] %vm120, 0.0
      %124 = vst.msk [vmem:[#allocation5 + $0x18] sm:$0xff] %vm120, 0.0
      %125 = vst.msk [vmem:[#allocation5 + $0x20] sm:$0xff] %vm120, 0.0
      %126 = vst.msk [vmem:[#allocation5 + $0x28] sm:$0xff] %vm120, 0.0
      %127 = vst.msk [vmem:[#allocation5 + $0x30] sm:$0xff] %vm120, 0.0
      %128 = vst.msk [vmem:[#allocation5 + $0x38] sm:$0xff] %vm120, 0.0
      %v129 = vld [vmem:[#allocation6] sm:$0xf]
      %v130 = vld [vmem:[#allocation6 + $0x4] sm:$0xf]
      %v131 = vld [vmem:[#allocation12] sm:$0xf]
      %v132 = vld [vmem:[#allocation12 + $0x4] sm:$0xf]
      %v133 = vld [vmem:[#allocation12 + $0x8] sm:$0xf]
      %v134 = vld [vmem:[#allocation12 + $0xc] sm:$0xf]
      %v135 = vld [vmem:[#allocation14] sm:$0x1]
      %v137 = vlaneseq
      %v138 = vshrl.u32 %v137, 7
      %v139 = vsub.s32 0, %v138
      %v140 = vrot.slane %v135, %v139
      %v144 = vunpack.c.l.b16 %v129
      %v145 = vunpack.c.l.b16 %v130
      %v146 = vpack.c.b16 %v145, %v144
      %v151 = vunpack.c.l.b16 %v131
      %v152 = vunpack.c.l.b16 %v132
      %v153 = vunpack.c.l.b16 %v133
      %v154 = vunpack.c.l.b16 %v134
      %v155 = vpack.c.b16 %v152, %v151
      %v156 = vpack.c.b16 %v154, %v153
      %vm159 = vcmask 261120
      %v161 = vsel %vm159, %v146, 0
      %163 = vmatprep.subr.bf16.mxu0 0
      %164 = vmatpush1.bf16.msra.mxu0 %v155
      %165 = vmatprep.subr.bf16.mxu0 0
      %166 = vmatpush1.bf16.msra.mxu0 %v156
      %167 = vmatprep.subr.bf16.mxu0 0
      %168 = vmatpush1.bf16.msra.mxu0 0
      %169 = vmatprep.subr.bf16.mxu0 0
      %170 = vmatpush1.bf16.msra.mxu0 0
      %171 = vmatprep.subr.bf16.mxu0 0
      %172 = vmatpush1.bf16.msra.mxu0 0
      %173 = vmatprep.subr.bf16.mxu0 0
      %174 = vmatpush1.bf16.msra.mxu0 0
      %175 = vmatprep.subr.bf16.mxu0 0
      %176 = vmatpush1.bf16.msra.mxu0 0
      %177 = vmatprep.subr.bf16.mxu0 0
      %178 = vmatpush1.bf16.msra.mxu0 0
      %179 = vmatprep.subr.bf16.mxu0 0
      %180 = vmatpush1.bf16.msra.mxu0 0
      %181 = vmatprep.subr.bf16.mxu0 0
      %182 = vmatpush1.bf16.msra.mxu0 0
      %183 = vmatprep.subr.bf16.mxu0 0
      %184 = vmatpush1.bf16.msra.mxu0 0
      %185 = vmatprep.subr.bf16.mxu0 0
      %186 = vmatpush1.bf16.msra.mxu0 0
      %187 = vmatprep.subr.bf16.mxu0 0
      %188 = vmatpush1.bf16.msra.mxu0 0
      %189 = vmatprep.subr.bf16.mxu0 0
      %190 = vmatpush1.bf16.msra.mxu0 0
      %191 = vmatprep.subr.bf16.mxu0 0
      %192 = vmatpush1.bf16.msra.mxu0 0
      %193 = vmatprep.subr.bf16.mxu0 0
      %194 = vmatpush1.bf16.msra.mxu0 0
      %195 = vmatprep.mubr.bf16.mxu0 0
      %196 = vmatmul.mubr.bf16.gmra.mrb[0].mxu0 %v161
      %v197 = vpop.f32.mrb[0].mxu0
      %v198 = vadd.f32 %v140, %v197
      %v199 = vpop.f32.mrb[0].mxu0
      %v200 = vpop.f32.mrb[0].mxu0
      %v201 = vadd.f32 %v140, %v200
      %v202 = vpop.f32.mrb[0].mxu0
      %203 = vdwg.mxu0
      %v204 = vpack.c.bf16 %v201, %v198
      %206 = vrot.lane.b32.xlu0 %v204, 120
      %v207 = vpop.permute.xlu0 %206
      %208 = vrot.lane.b32.xlu0 %v204, 112
      %v209 = vpop.permute.xlu0 %208
      %210 = vrot.lane.b32.xlu0 %v204, 104
      %v211 = vpop.permute.xlu0 %210
      %v214 = vpack.i.b16 %v207, %v204
      %v216 = vshrl.u32 %v204, 16
      %v217 = vshrl.u32 %v207, 16
      %v218 = vpack.i.b16 %v217, %v216
      %v222 = vpack.i.b16 %v211, %v209
      %v224 = vshrl.u32 %v209, 16
      %v225 = vshrl.u32 %v211, 16
      %v226 = vpack.i.b16 %v225, %v224
      %v229 = vpack.i.b16 0, 0
      %v231 = vshrl.u32 0, 16
      %v232 = vpack.i.b16 %v231, %v231
      %v234 = vcombine.high %v214, %v229
      %v236 = vunpack.c.l.s4 1983009808
      %v237 = vunpack.c.0.s8 %v236
      %v238 = vlaneseq
      %v239 = vshrl.u32 %v238, 7
      %v240 = vsub.s32 %v237, %v239
      %v241 = vrot.slane %v214, %v240
      %v243 = vunpack.c.l.s4 1983009808
      %v244 = vunpack.c.0.s8 %v243
      %v245 = vlaneseq
      %v246 = vshrl.u32 %v245, 7
      %v247 = vsub.s32 %v244, %v246
      %v248 = vrot.slane %v234, %v247
      %v249 = vcombine.high %v222, %v229
      %v251 = vunpack.c.l.s4 1983009808
      %v252 = vunpack.c.0.s8 %v251
      %v253 = vlaneseq
      %v254 = vshrl.u32 %v253, 7
      %v255 = vsub.s32 %v252, %v254
      %v256 = vrot.slane %v222, %v255
      %v258 = vunpack.c.l.s4 1983009808
      %v259 = vunpack.c.0.s8 %v258
      %v260 = vlaneseq
      %v261 = vshrl.u32 %v260, 7
      %v262 = vsub.s32 %v259, %v261
      %v263 = vrot.slane %v249, %v262
      %v264 = vcombine.low %v241, %v256
      %v265 = vcombine.high %v241, %v256
      %v267 = vunpack.c.l.s4 1934713408
      %v268 = vunpack.c.0.s8 %v267
      %v269 = vlaneseq
      %v270 = vshrl.u32 %v269, 7
      %v271 = vsub.s32 %v268, %v270
      %v272 = vrot.slane %v264, %v271
      %v274 = vunpack.c.l.s4 1934713408
      %v275 = vunpack.c.0.s8 %v274
      %v276 = vlaneseq
      %v277 = vshrl.u32 %v276, 7
      %v278 = vsub.s32 %v275, %v277
      %v279 = vrot.slane %v265, %v278
      %v280 = vcombine.low %v248, %v263
      %v281 = vcombine.high %v248, %v263
      %v283 = vunpack.c.l.s4 1934713408
      %v284 = vunpack.c.0.s8 %v283
      %v285 = vlaneseq
      %v286 = vshrl.u32 %v285, 7
      %v287 = vsub.s32 %v284, %v286
      %v288 = vrot.slane %v280, %v287
      %v290 = vunpack.c.l.s4 1934713408
      %v291 = vunpack.c.0.s8 %v290
      %v292 = vlaneseq
      %v293 = vshrl.u32 %v292, 7
      %v294 = vsub.s32 %v291, %v293
      %v295 = vrot.slane %v281, %v294
      %v296 = vcombine.high %v272, 0
      %v297 = vcombine.high %v279, 0
      %v298 = vcombine.high %v288, 0
      %v299 = vcombine.high %v295, 0
      %v300 = vcombine.high %v218, %v232
      %v302 = vunpack.c.l.s4 1983009808
      %v303 = vunpack.c.0.s8 %v302
      %v304 = vlaneseq
      %v305 = vshrl.u32 %v304, 7
      %v306 = vsub.s32 %v303, %v305
      %v307 = vrot.slane %v218, %v306
      %v309 = vunpack.c.l.s4 1983009808
      %v310 = vunpack.c.0.s8 %v309
      %v311 = vlaneseq
      %v312 = vshrl.u32 %v311, 7
      %v313 = vsub.s32 %v310, %v312
      %v314 = vrot.slane %v300, %v313
      %v315 = vcombine.high %v226, %v232
      %v317 = vunpack.c.l.s4 1983009808
      %v318 = vunpack.c.0.s8 %v317
      %v319 = vlaneseq
      %v320 = vshrl.u32 %v319, 7
      %v321 = vsub.s32 %v318, %v320
      %v322 = vrot.slane %v226, %v321
      %v324 = vunpack.c.l.s4 1983009808
      %v325 = vunpack.c.0.s8 %v324
      %v326 = vlaneseq
      %v327 = vshrl.u32 %v326, 7
      %v328 = vsub.s32 %v325, %v327
      %v329 = vrot.slane %v315, %v328
      %v330 = vcombine.low %v307, %v322
      %v331 = vcombine.high %v307, %v322
      %v333 = vunpack.c.l.s4 1934713408
      %v334 = vunpack.c.0.s8 %v333
      %v335 = vlaneseq
      %v336 = vshrl.u32 %v335, 7
      %v337 = vsub.s32 %v334, %v336
      %v338 = vrot.slane %v330, %v337
      %v340 = vunpack.c.l.s4 1934713408
      %v341 = vunpack.c.0.s8 %v340
      %v342 = vlaneseq
      %v343 = vshrl.u32 %v342, 7
      %v344 = vsub.s32 %v341, %v343
      %v345 = vrot.slane %v331, %v344
      %v346 = vcombine.low %v314, %v329
      %v347 = vcombine.high %v314, %v329
      %v349 = vunpack.c.l.s4 1934713408
      %v350 = vunpack.c.0.s8 %v349
      %v351 = vlaneseq
      %v352 = vshrl.u32 %v351, 7
      %v353 = vsub.s32 %v350, %v352
      %v354 = vrot.slane %v346, %v353
      %v356 = vunpack.c.l.s4 1934713408
      %v357 = vunpack.c.0.s8 %v356
      %v358 = vlaneseq
      %v359 = vshrl.u32 %v358, 7
      %v360 = vsub.s32 %v357, %v359
      %v361 = vrot.slane %v347, %v360
      %v362 = vcombine.high %v338, 0
      %v363 = vcombine.high %v345, 0
      %v364 = vcombine.high %v354, 0
      %v365 = vcombine.high %v361, 0
      %v366 = vcombine.low %v272, %v279
      %v368 = vunpack.c.l.s4 1983009808
      %v369 = vunpack.c.0.s8 %v368
      %v370 = vlaneseq
      %v371 = vshrl.u32 %v370, 7
      %v372 = vsub.s32 %v369, %v371
      %v373 = vrot.slane %v366, %v372
      %v374 = vcombine.low %v296, %v297
      %v376 = vunpack.c.l.s4 1983009808
      %v377 = vunpack.c.0.s8 %v376
      %v378 = vlaneseq
      %v379 = vshrl.u32 %v378, 7
      %v380 = vsub.s32 %v377, %v379
      %v381 = vrot.slane %v374, %v380
      %v382 = vcombine.low %v288, %v295
      %v384 = vunpack.c.l.s4 1983009808
      %v385 = vunpack.c.0.s8 %v384
      %v386 = vlaneseq
      %v387 = vshrl.u32 %v386, 7
      %v388 = vsub.s32 %v385, %v387
      %v389 = vrot.slane %v382, %v388
      %v390 = vcombine.low %v298, %v299
      %v392 = vunpack.c.l.s4 1983009808
      %v393 = vunpack.c.0.s8 %v392
      %v394 = vlaneseq
      %v395 = vshrl.u32 %v394, 7
      %v396 = vsub.s32 %v393, %v395
      %v397 = vrot.slane %v390, %v396
      %v398 = vcombine.low %v373, %v381
      %v400 = vunpack.c.l.s4 1934713408
      %v401 = vunpack.c.0.s8 %v400
      %v402 = vlaneseq
      %v403 = vshrl.u32 %v402, 7
      %v404 = vsub.s32 %v401, %v403
      %v405 = vrot.slane %v398, %v404
      %v406 = vcombine.low %v389, %v397
      %v408 = vunpack.c.l.s4 1934713408
      %v409 = vunpack.c.0.s8 %v408
      %v410 = vlaneseq
      %v411 = vshrl.u32 %v410, 7
      %v412 = vsub.s32 %v409, %v411
      %v413 = vrot.slane %v406, %v412
      %v414 = vcombine.low %v405, %v413
      %v415 = vcombine.high %v405, %v413
      %v416 = vcombine.low %v338, %v345
      %v418 = vunpack.c.l.s4 1983009808
      %v419 = vunpack.c.0.s8 %v418
      %v420 = vlaneseq
      %v421 = vshrl.u32 %v420, 7
      %v422 = vsub.s32 %v419, %v421
      %v423 = vrot.slane %v416, %v422
      %v424 = vcombine.low %v362, %v363
      %v426 = vunpack.c.l.s4 1983009808
      %v427 = vunpack.c.0.s8 %v426
      %v428 = vlaneseq
      %v429 = vshrl.u32 %v428, 7
      %v430 = vsub.s32 %v427, %v429
      %v431 = vrot.slane %v424, %v430
      %v432 = vcombine.low %v354, %v361
      %v434 = vunpack.c.l.s4 1983009808
      %v435 = vunpack.c.0.s8 %v434
      %v436 = vlaneseq
      %v437 = vshrl.u32 %v436, 7
      %v438 = vsub.s32 %v435, %v437
      %v439 = vrot.slane %v432, %v438
      %v440 = vcombine.low %v364, %v365
      %v442 = vunpack.c.l.s4 1983009808
      %v443 = vunpack.c.0.s8 %v442
      %v444 = vlaneseq
      %v445 = vshrl.u32 %v444, 7
      %v446 = vsub.s32 %v443, %v445
      %v447 = vrot.slane %v440, %v446
      %v448 = vcombine.low %v423, %v431
      %v450 = vunpack.c.l.s4 1934713408
      %v451 = vunpack.c.0.s8 %v450
      %v452 = vlaneseq
      %v453 = vshrl.u32 %v452, 7
      %v454 = vsub.s32 %v451, %v453
      %v455 = vrot.slane %v448, %v454
      %v456 = vcombine.low %v439, %v447
      %v458 = vunpack.c.l.s4 1934713408
      %v459 = vunpack.c.0.s8 %v458
      %v460 = vlaneseq
      %v461 = vshrl.u32 %v460, 7
      %v462 = vsub.s32 %v459, %v461
      %v463 = vrot.slane %v456, %v462
      %v464 = vcombine.low %v455, %v463
      %v465 = vcombine.high %v455, %v463
      %v468 = vpack.i.b16 %v464, %v414
      %v469 = vshrl.u32 %v414, 16
      %v470 = vshrl.u32 %v464, 16
      %v471 = vpack.i.b16 %v470, %v469
      %v474 = vpack.i.b16 %v465, %v415
      %v475 = vshrl.u32 %v415, 16
      %v476 = vshrl.u32 %v465, 16
      %v477 = vpack.i.b16 %v476, %v475
      %v478 = vunpack.c.l.b16 %v468
      %v479 = vunpack.c.h.b16 %v468
      %v480 = vunpack.c.l.b16 %v471
      %v481 = vunpack.c.h.b16 %v471
      %v482 = vunpack.c.l.b16 %v474
      %v483 = vunpack.c.h.b16 %v474
      %v484 = vunpack.c.l.b16 %v477
      %v485 = vunpack.c.h.b16 %v477
      %v486 = vpack.c.b16 %v478, %v478
      %v487 = vpack.c.b16 %v479, %v479
      %v488 = vpack.c.b16 %v480, %v480
      %v489 = vpack.c.b16 %v481, %v481
      %v490 = vpack.c.b16 %v482, %v482
      %v491 = vpack.c.b16 %v483, %v483
      %v492 = vpack.c.b16 %v484, %v484
      %v493 = vpack.c.b16 %v485, %v485
      %vm502 = vcmask 60416
      %503 = vst.msk [vmem:[#allocation2] sm:$0xf] %vm502, %v486
      %504 = vst.msk [vmem:[#allocation2 + $0x4] sm:$0xf] %vm502, %v487
      %505 = vst.msk [vmem:[#allocation2 + $0x8] sm:$0xf] %vm502, %v488
      %506 = vst.msk [vmem:[#allocation2 + $0xc] sm:$0xf] %vm502, %v489
      %507 = vst.msk [vmem:[#allocation2 + $0x10] sm:$0xf] %vm502, %v490
      %508 = vst.msk [vmem:[#allocation2 + $0x14] sm:$0xf] %vm502, %v491
      %509 = vst.msk [vmem:[#allocation2 + $0x18] sm:$0xf] %vm502, %v492
      %510 = vst.msk [vmem:[#allocation2 + $0x1c] sm:$0xf] %vm502, %v493
    $region53: #{tpu_custom_call.1} parent=1 // pred_fallthru
      _
    %v511 = vld [vmem:[#allocation9] sm:$0xf]
    %v512 = vld [vmem:[#allocation9 + $0x4] sm:$0xf]
    %v513 = vld [vmem:[#allocation11] sm:$0xf]
    %v514 = vld [vmem:[#allocation11 + $0x4] sm:$0xf]
    %s515 = scalar_lea.vmem [#allocation12], 16
    %v516 = vld [vmem:[%s515] sm:$0xf]
    %v517 = vld [vmem:[%s515 + $0x4] sm:$0xf]
    %v518 = vld [vmem:[%s515 + $0x8] sm:$0xf]
    %v519 = vld [vmem:[%s515 + $0xc] sm:$0xf]
    %s520 = scalar_lea.vmem [#allocation14], 1
    %v521 = vld [vmem:[%s520] sm:$0x1]
    %v523 = vlaneseq
    %v524 = vshrl.u32 %v523, 7
    %v525 = vsub.s32 0, %v524
    %v526 = vrot.slane %v521, %v525
    %v530 = vunpack.c.l.b16 %v511
    %v531 = vunpack.c.l.b16 %v512
    %v532 = vpack.c.b16 %v531, %v530
    %v537 = vunpack.c.l.b16 %v516
    %v538 = vunpack.c.l.b16 %v517
    %v539 = vunpack.c.l.b16 %v518
    %v540 = vunpack.c.l.b16 %v519
    %v541 = vpack.c.b16 %v538, %v537
    %v542 = vpack.c.b16 %v540, %v539
    %vm545 = vcmask 261120
    %v547 = vsel %vm545, %v532, 0
    %549 = vmatprep.subr.bf16.mxu0 0
    %550 = vmatpush1.bf16.msra.mxu0 %v541
    %551 = vmatprep.subr.bf16.mxu0 0
    %552 = vmatpush1.bf16.msra.mxu0 %v542
    %553 = vmatprep.subr.bf16.mxu0 0
    %554 = vmatpush1.bf16.msra.mxu0 0
    %555 = vmatprep.subr.bf16.mxu0 0
    %556 = vmatpush1.bf16.msra.mxu0 0
    %557 = vmatprep.subr.bf16.mxu0 0
    %558 = vmatpush1.bf16.msra.mxu0 0
    %559 = vmatprep.subr.bf16.mxu0 0
    %560 = vmatpush1.bf16.msra.mxu0 0
    %561 = vmatprep.subr.bf16.mxu0 0
    %562 = vmatpush1.bf16.msra.mxu0 0
    %563 = vmatprep.subr.bf16.mxu0 0
    %564 = vmatpush1.bf16.msra.mxu0 0
    %565 = vmatprep.subr.bf16.mxu0 0
    %566 = vmatpush1.bf16.msra.mxu0 0
    %567 = vmatprep.subr.bf16.mxu0 0
    %568 = vmatpush1.bf16.msra.mxu0 0
    %569 = vmatprep.subr.bf16.mxu0 0
    %570 = vmatpush1.bf16.msra.mxu0 0
    %571 = vmatprep.subr.bf16.mxu0 0
    %572 = vmatpush1.bf16.msra.mxu0 0
    %573 = vmatprep.subr.bf16.mxu0 0
    %574 = vmatpush1.bf16.msra.mxu0 0
    %575 = vmatprep.subr.bf16.mxu0 0
    %576 = vmatpush1.bf16.msra.mxu0 0
    %577 = vmatprep.subr.bf16.mxu0 0
    %578 = vmatpush1.bf16.msra.mxu0 0
    %579 = vmatprep.subr.bf16.mxu0 0
    %580 = vmatpush1.bf16.msra.mxu0 0
    %581 = vmatprep.mubr.bf16.mxu0 0
    %582 = vmatmul.mubr.bf16.gmra.mrb[0].mxu0 %v547
    %v583 = vpop.f32.mrb[0].mxu0
    %v584 = vadd.f32 %v526, %v583
    %v585 = vpop.f32.mrb[0].mxu0
    %v586 = vpop.f32.mrb[0].mxu0
    %v587 = vadd.f32 %v526, %v586
    %v588 = vpop.f32.mrb[0].mxu0
    %589 = vdwg.mxu0
    %s590 = scalar_lea.vmem [#allocation12], 32
    %v591 = vld [vmem:[%s590] sm:$0xf]
    %v592 = vld [vmem:[%s590 + $0x4] sm:$0xf]
    %v593 = vld [vmem:[%s590 + $0x8] sm:$0xf]
    %v594 = vld [vmem:[%s590 + $0xc] sm:$0xf]
    %s595 = scalar_lea.vmem [#allocation14], 2
    %v596 = vld [vmem:[%s595] sm:$0x1]
    %v598 = vlaneseq
    %v599 = vshrl.u32 %v598, 7
    %v600 = vsub.s32 0, %v599
    %v601 = vrot.slane %v596, %v600
    %v605 = vunpack.c.l.b16 %v513
    %v606 = vunpack.c.l.b16 %v514
    %v607 = vpack.c.b16 %v606, %v605
    %v612 = vunpack.c.l.b16 %v591
    %v613 = vunpack.c.l.b16 %v592
    %v614 = vunpack.c.l.b16 %v593
    %v615 = vunpack.c.l.b16 %v594
    %v616 = vpack.c.b16 %v613, %v612
    %v617 = vpack.c.b16 %v615, %v614
    %v621 = vsel %vm545, %v607, 0
    %623 = vmatprep.subr.bf16.mxu0 0
    %624 = vmatpush1.bf16.msra.mxu0 %v616
    %625 = vmatprep.subr.bf16.mxu0 0
    %626 = vmatpush1.bf16.msra.mxu0 %v617
    %627 = vmatprep.subr.bf16.mxu0 0
    %628 = vmatpush1.bf16.msra.mxu0 0
    %629 = vmatprep.subr.bf16.mxu0 0
    %630 = vmatpush1.bf16.msra.mxu0 0
    %631 = vmatprep.subr.bf16.mxu0 0
    %632 = vmatpush1.bf16.msra.mxu0 0
    %633 = vmatprep.subr.bf16.mxu0 0
    %634 = vmatpush1.bf16.msra.mxu0 0
    %635 = vmatprep.subr.bf16.mxu0 0
    %636 = vmatpush1.bf16.msra.mxu0 0
    %637 = vmatprep.subr.bf16.mxu0 0
    %638 = vmatpush1.bf16.msra.mxu0 0
    %639 = vmatprep.subr.bf16.mxu0 0
    %640 = vmatpush1.bf16.msra.mxu0 0
    %641 = vmatprep.subr.bf16.mxu0 0
    %642 = vmatpush1.bf16.msra.mxu0 0
    %643 = vmatprep.subr.bf16.mxu0 0
    %644 = vmatpush1.bf16.msra.mxu0 0
    %645 = vmatprep.subr.bf16.mxu0 0
    %646 = vmatpush1.bf16.msra.mxu0 0
    %647 = vmatprep.subr.bf16.mxu0 0
    %648 = vmatpush1.bf16.msra.mxu0 0
    %649 = vmatprep.subr.bf16.mxu0 0
    %650 = vmatpush1.bf16.msra.mxu0 0
    %651 = vmatprep.subr.bf16.mxu0 0
    %652 = vmatpush1.bf16.msra.mxu0 0
    %653 = vmatprep.subr.bf16.mxu0 0
    %654 = vmatpush1.bf16.msra.mxu0 0
    %655 = vmatprep.mubr.bf16.mxu0 0
    %656 = vmatmul.mubr.bf16.gmra.mrb[0].mxu0 %v621
    %v657 = vpop.f32.mrb[0].mxu0
    %v658 = vadd.f32 %v601, %v657
    %v659 = vpop.f32.mrb[0].mxu0
    %v660 = vpop.f32.mrb[0].mxu0
    %v661 = vadd.f32 %v601, %v660
    %v662 = vpop.f32.mrb[0].mxu0
    %663 = vdwg.mxu0
    %v664 = vpack.c.bf16 %v587, %v584
    %666 = vrot.lane.b32.xlu0 %v664, 120
    %v667 = vpop.permute.xlu0 %666
    %668 = vrot.lane.b32.xlu0 %v664, 112
    %v669 = vpop.permute.xlu0 %668
    %670 = vrot.lane.b32.xlu0 %v664, 104
    %v671 = vpop.permute.xlu0 %670
    %v674 = vpack.i.b16 %v667, %v664
    %v676 = vshrl.u32 %v664, 16
    %v677 = vshrl.u32 %v667, 16
    %v678 = vpack.i.b16 %v677, %v676
    %v682 = vpack.i.b16 %v671, %v669
    %v684 = vshrl.u32 %v669, 16
    %v685 = vshrl.u32 %v671, 16
    %v686 = vpack.i.b16 %v685, %v684
    %v689 = vpack.i.b16 0, 0
    %v691 = vshrl.u32 0, 16
    %v692 = vpack.i.b16 %v691, %v691
    %v694 = vcombine.high %v674, %v689
    %v696 = vunpack.c.l.s4 1983009808
    %v697 = vunpack.c.0.s8 %v696
    %v698 = vlaneseq
    %v699 = vshrl.u32 %v698, 7
    %v700 = vsub.s32 %v697, %v699
    %v701 = vrot.slane %v674, %v700
    %v703 = vunpack.c.l.s4 1983009808
    %v704 = vunpack.c.0.s8 %v703
    %v705 = vlaneseq
    %v706 = vshrl.u32 %v705, 7
    %v707 = vsub.s32 %v704, %v706
    %v708 = vrot.slane %v694, %v707
    %v709 = vcombine.high %v682, %v689
    %v711 = vunpack.c.l.s4 1983009808
    %v712 = vunpack.c.0.s8 %v711
    %v713 = vlaneseq
    %v714 = vshrl.u32 %v713, 7
    %v715 = vsub.s32 %v712, %v714
    %v716 = vrot.slane %v682, %v715
    %v718 = vunpack.c.l.s4 1983009808
    %v719 = vunpack.c.0.s8 %v718
    %v720 = vlaneseq
    %v721 = vshrl.u32 %v720, 7
    %v722 = vsub.s32 %v719, %v721
    %v723 = vrot.slane %v709, %v722
    %v724 = vcombine.low %v701, %v716
    %v725 = vcombine.high %v701, %v716
    %v727 = vunpack.c.l.s4 1934713408
    %v728 = vunpack.c.0.s8 %v727
    %v729 = vlaneseq
    %v730 = vshrl.u32 %v729, 7
    %v731 = vsub.s32 %v728, %v730
    %v732 = vrot.slane %v724, %v731
    %v734 = vunpack.c.l.s4 1934713408
    %v735 = vunpack.c.0.s8 %v734
    %v736 = vlaneseq
    %v737 = vshrl.u32 %v736, 7
    %v738 = vsub.s32 %v735, %v737
    %v739 = vrot.slane %v725, %v738
    %v740 = vcombine.low %v708, %v723
    %v741 = vcombine.high %v708, %v723
    %v743 = vunpack.c.l.s4 1934713408
    %v744 = vunpack.c.0.s8 %v743
    %v745 = vlaneseq
    %v746 = vshrl.u32 %v745, 7
    %v747 = vsub.s32 %v744, %v746
    %v748 = vrot.slane %v740, %v747
    %v750 = vunpack.c.l.s4 1934713408
    %v751 = vunpack.c.0.s8 %v750
    %v752 = vlaneseq
    %v753 = vshrl.u32 %v752, 7
    %v754 = vsub.s32 %v751, %v753
    %v755 = vrot.slane %v741, %v754
    %v756 = vcombine.high %v732, 0
    %v757 = vcombine.high %v739, 0
    %v758 = vcombine.high %v748, 0
    %v759 = vcombine.high %v755, 0
    %v760 = vcombine.high %v678, %v692
    %v762 = vunpack.c.l.s4 1983009808
    %v763 = vunpack.c.0.s8 %v762
    %v764 = vlaneseq
    %v765 = vshrl.u32 %v764, 7
    %v766 = vsub.s32 %v763, %v765
    %v767 = vrot.slane %v678, %v766
    %v769 = vunpack.c.l.s4 1983009808
    %v770 = vunpack.c.0.s8 %v769
    %v771 = vlaneseq
    %v772 = vshrl.u32 %v771, 7
    %v773 = vsub.s32 %v770, %v772
    %v774 = vrot.slane %v760, %v773
    %v775 = vcombine.high %v686, %v692
    %v777 = vunpack.c.l.s4 1983009808
    %v778 = vunpack.c.0.s8 %v777
    %v779 = vlaneseq
    %v780 = vshrl.u32 %v779, 7
    %v781 = vsub.s32 %v778, %v780
    %v782 = vrot.slane %v686, %v781
    %v784 = vunpack.c.l.s4 1983009808
    %v785 = vunpack.c.0.s8 %v784
    %v786 = vlaneseq
    %v787 = vshrl.u32 %v786, 7
    %v788 = vsub.s32 %v785, %v787
    %v789 = vrot.slane %v775, %v788
    %v790 = vcombine.low %v767, %v782
    %v791 = vcombine.high %v767, %v782
    %v793 = vunpack.c.l.s4 1934713408
    %v794 = vunpack.c.0.s8 %v793
    %v795 = vlaneseq
    %v796 = vshrl.u32 %v795, 7
    %v797 = vsub.s32 %v794, %v796
    %v798 = vrot.slane %v790, %v797
    %v800 = vunpack.c.l.s4 1934713408
    %v801 = vunpack.c.0.s8 %v800
    %v802 = vlaneseq
    %v803 = vshrl.u32 %v802, 7
    %v804 = vsub.s32 %v801, %v803
    %v805 = vrot.slane %v791, %v804
    %v806 = vcombine.low %v774, %v789
    %v807 = vcombine.high %v774, %v789
    %v809 = vunpack.c.l.s4 1934713408
    %v810 = vunpack.c.0.s8 %v809
    %v811 = vlaneseq
    %v812 = vshrl.u32 %v811, 7
    %v813 = vsub.s32 %v810, %v812
    %v814 = vrot.slane %v806, %v813
    %v816 = vunpack.c.l.s4 1934713408
    %v817 = vunpack.c.0.s8 %v816
    %v818 = vlaneseq
    %v819 = vshrl.u32 %v818, 7
    %v820 = vsub.s32 %v817, %v819
    %v821 = vrot.slane %v807, %v820
    %v822 = vcombine.high %v798, 0
    %v823 = vcombine.high %v805, 0
    %v824 = vcombine.high %v814, 0
    %v825 = vcombine.high %v821, 0
    %v826 = vcombine.low %v732, %v739
    %v828 = vunpack.c.l.s4 1983009808
    %v829 = vunpack.c.0.s8 %v828
    %v830 = vlaneseq
    %v831 = vshrl.u32 %v830, 7
    %v832 = vsub.s32 %v829, %v831
    %v833 = vrot.slane %v826, %v832
    %v834 = vcombine.low %v756, %v757
    %v836 = vunpack.c.l.s4 1983009808
    %v837 = vunpack.c.0.s8 %v836
    %v838 = vlaneseq
    %v839 = vshrl.u32 %v838, 7
    %v840 = vsub.s32 %v837, %v839
    %v841 = vrot.slane %v834, %v840
    %v842 = vcombine.low %v748, %v755
    %v844 = vunpack.c.l.s4 1983009808
    %v845 = vunpack.c.0.s8 %v844
    %v846 = vlaneseq
    %v847 = vshrl.u32 %v846, 7
    %v848 = vsub.s32 %v845, %v847
    %v849 = vrot.slane %v842, %v848
    %v850 = vcombine.low %v758, %v759
    %v852 = vunpack.c.l.s4 1983009808
    %v853 = vunpack.c.0.s8 %v852
    %v854 = vlaneseq
    %v855 = vshrl.u32 %v854, 7
    %v856 = vsub.s32 %v853, %v855
    %v857 = vrot.slane %v850, %v856
    %v858 = vcombine.low %v833, %v841
    %v860 = vunpack.c.l.s4 1934713408
    %v861 = vunpack.c.0.s8 %v860
    %v862 = vlaneseq
    %v863 = vshrl.u32 %v862, 7
    %v864 = vsub.s32 %v861, %v863
    %v865 = vrot.slane %v858, %v864
    %v866 = vcombine.low %v849, %v857
    %v868 = vunpack.c.l.s4 1934713408
    %v869 = vunpack.c.0.s8 %v868
    %v870 = vlaneseq
    %v871 = vshrl.u32 %v870, 7
    %v872 = vsub.s32 %v869, %v871
    %v873 = vrot.slane %v866, %v872
    %v874 = vcombine.low %v865, %v873
    %v875 = vcombine.high %v865, %v873
    %v876 = vcombine.low %v798, %v805
    %v878 = vunpack.c.l.s4 1983009808
    %v879 = vunpack.c.0.s8 %v878
    %v880 = vlaneseq
    %v881 = vshrl.u32 %v880, 7
    %v882 = vsub.s32 %v879, %v881
    %v883 = vrot.slane %v876, %v882
    %v884 = vcombine.low %v822, %v823
    %v886 = vunpack.c.l.s4 1983009808
    %v887 = vunpack.c.0.s8 %v886
    %v888 = vlaneseq
    %v889 = vshrl.u32 %v888, 7
    %v890 = vsub.s32 %v887, %v889
    %v891 = vrot.slane %v884, %v890
    %v892 = vcombine.low %v814, %v821
    %v894 = vunpack.c.l.s4 1983009808
    %v895 = vunpack.c.0.s8 %v894
    %v896 = vlaneseq
    %v897 = vshrl.u32 %v896, 7
    %v898 = vsub.s32 %v895, %v897
    %v899 = vrot.slane %v892, %v898
    %v900 = vcombine.low %v824, %v825
    %v902 = vunpack.c.l.s4 1983009808
    %v903 = vunpack.c.0.s8 %v902
    %v904 = vlaneseq
    %v905 = vshrl.u32 %v904, 7
    %v906 = vsub.s32 %v903, %v905
    %v907 = vrot.slane %v900, %v906
    %v908 = vcombine.low %v883, %v891
    %v910 = vunpack.c.l.s4 1934713408
    %v911 = vunpack.c.0.s8 %v910
    %v912 = vlaneseq
    %v913 = vshrl.u32 %v912, 7
    %v914 = vsub.s32 %v911, %v913
    %v915 = vrot.slane %v908, %v914
    %v916 = vcombine.low %v899, %v907
    %v918 = vunpack.c.l.s4 1934713408
    %v919 = vunpack.c.0.s8 %v918
    %v920 = vlaneseq
    %v921 = vshrl.u32 %v920, 7
    %v922 = vsub.s32 %v919, %v921
    %v923 = vrot.slane %v916, %v922
    %v924 = vcombine.low %v915, %v923
    %v925 = vcombine.high %v915, %v923
    %v928 = vpack.i.b16 %v924, %v874
    %v929 = vshrl.u32 %v874, 16
    %v930 = vshrl.u32 %v924, 16
    %v931 = vpack.i.b16 %v930, %v929
    %v934 = vpack.i.b16 %v925, %v875
    %v935 = vshrl.u32 %v875, 16
    %v936 = vshrl.u32 %v925, 16
    %v937 = vpack.i.b16 %v936, %v935
    %v938 = vunpack.c.l.b16 %v928
    %v939 = vunpack.c.h.b16 %v928
    %v940 = vunpack.c.l.b16 %v931
    %v941 = vunpack.c.h.b16 %v931
    %v942 = vunpack.c.l.b16 %v934
    %v943 = vunpack.c.h.b16 %v934
    %v944 = vunpack.c.l.b16 %v937
    %v945 = vunpack.c.h.b16 %v937
    %v946 = vpack.c.b16 %v938, %v938
    %v947 = vpack.c.b16 %v939, %v939
    %v948 = vpack.c.b16 %v940, %v940
    %v949 = vpack.c.b16 %v941, %v941
    %v950 = vpack.c.b16 %v942, %v942
    %v951 = vpack.c.b16 %v943, %v943
    %v952 = vpack.c.b16 %v944, %v944
    %v953 = vpack.c.b16 %v945, %v945
    %v954 = vpack.c.bf16 %v661, %v658
    %956 = vrot.lane.b32.xlu0 %v954, 120
    %v957 = vpop.permute.xlu0 %956
    %958 = vrot.lane.b32.xlu0 %v954, 112
    %v959 = vpop.permute.xlu0 %958
    %960 = vrot.lane.b32.xlu0 %v954, 104
    %v961 = vpop.permute.xlu0 %960
    %v964 = vpack.i.b16 %v957, %v954
    %v966 = vshrl.u32 %v954, 16
    %v967 = vshrl.u32 %v957, 16
    %v968 = vpack.i.b16 %v967, %v966
    %v972 = vpack.i.b16 %v961, %v959
    %v974 = vshrl.u32 %v959, 16
    %v975 = vshrl.u32 %v961, 16
    %v976 = vpack.i.b16 %v975, %v974
    %v978 = vcombine.high %v964, %v689
    %v980 = vunpack.c.l.s4 1983009808
    %v981 = vunpack.c.0.s8 %v980
    %v982 = vlaneseq
    %v983 = vshrl.u32 %v982, 7
    %v984 = vsub.s32 %v981, %v983
    %v985 = vrot.slane %v964, %v984
    %v987 = vunpack.c.l.s4 1983009808
    %v988 = vunpack.c.0.s8 %v987
    %v989 = vlaneseq
    %v990 = vshrl.u32 %v989, 7
    %v991 = vsub.s32 %v988, %v990
    %v992 = vrot.slane %v978, %v991
    %v993 = vcombine.high %v972, %v689
    %v995 = vunpack.c.l.s4 1983009808
    %v996 = vunpack.c.0.s8 %v995
    %v997 = vlaneseq
    %v998 = vshrl.u32 %v997, 7
    %v999 = vsub.s32 %v996, %v998
    %v1000 = vrot.slane %v972, %v999
    %v1002 = vunpack.c.l.s4 1983009808
    %v1003 = vunpack.c.0.s8 %v1002
    %v1004 = vlaneseq
    %v1005 = vshrl.u32 %v1004, 7
    %v1006 = vsub.s32 %v1003, %v1005
    %v1007 = vrot.slane %v993, %v1006
    %v1008 = vcombine.low %v985, %v1000
    %v1009 = vcombine.high %v985, %v1000
    %v1011 = vunpack.c.l.s4 1934713408
    %v1012 = vunpack.c.0.s8 %v1011
    %v1013 = vlaneseq
    %v1014 = vshrl.u32 %v1013, 7
    %v1015 = vsub.s32 %v1012, %v1014
    %v1016 = vrot.slane %v1008, %v1015
    %v1018 = vunpack.c.l.s4 1934713408
    %v1019 = vunpack.c.0.s8 %v1018
    %v1020 = vlaneseq
    %v1021 = vshrl.u32 %v1020, 7
    %v1022 = vsub.s32 %v1019, %v1021
    %v1023 = vrot.slane %v1009, %v1022
    %v1024 = vcombine.low %v992, %v1007
    %v1025 = vcombine.high %v992, %v1007
    %v1027 = vunpack.c.l.s4 1934713408
    %v1028 = vunpack.c.0.s8 %v1027
    %v1029 = vlaneseq
    %v1030 = vshrl.u32 %v1029, 7
    %v1031 = vsub.s32 %v1028, %v1030
    %v1032 = vrot.slane %v1024, %v1031
    %v1034 = vunpack.c.l.s4 1934713408
    %v1035 = vunpack.c.0.s8 %v1034
    %v1036 = vlaneseq
    %v1037 = vshrl.u32 %v1036, 7
    %v1038 = vsub.s32 %v1035, %v1037
    %v1039 = vrot.slane %v1025, %v1038
    %v1040 = vcombine.high %v1016, 0
    %v1041 = vcombine.high %v1023, 0
    %v1042 = vcombine.high %v1032, 0
    %v1043 = vcombine.high %v1039, 0
    %v1044 = vcombine.high %v968, %v692
    %v1046 = vunpack.c.l.s4 1983009808
    %v1047 = vunpack.c.0.s8 %v1046
    %v1048 = vlaneseq
    %v1049 = vshrl.u32 %v1048, 7
    %v1050 = vsub.s32 %v1047, %v1049
    %v1051 = vrot.slane %v968, %v1050
    %v1053 = vunpack.c.l.s4 1983009808
    %v1054 = vunpack.c.0.s8 %v1053
    %v1055 = vlaneseq
    %v1056 = vshrl.u32 %v1055, 7
    %v1057 = vsub.s32 %v1054, %v1056
    %v1058 = vrot.slane %v1044, %v1057
    %v1059 = vcombine.high %v976, %v692
    %v1061 = vunpack.c.l.s4 1983009808
    %v1062 = vunpack.c.0.s8 %v1061
    %v1063 = vlaneseq
    %v1064 = vshrl.u32 %v1063, 7
    %v1065 = vsub.s32 %v1062, %v1064
    %v1066 = vrot.slane %v976, %v1065
    %v1068 = vunpack.c.l.s4 1983009808
    %v1069 = vunpack.c.0.s8 %v1068
    %v1070 = vlaneseq
    %v1071 = vshrl.u32 %v1070, 7
    %v1072 = vsub.s32 %v1069, %v1071
    %v1073 = vrot.slane %v1059, %v1072
    %v1074 = vcombine.low %v1051, %v1066
    %v1075 = vcombine.high %v1051, %v1066
    %v1077 = vunpack.c.l.s4 1934713408
    %v1078 = vunpack.c.0.s8 %v1077
    %v1079 = vlaneseq
    %v1080 = vshrl.u32 %v1079, 7
    %v1081 = vsub.s32 %v1078, %v1080
    %v1082 = vrot.slane %v1074, %v1081
    %v1084 = vunpack.c.l.s4 1934713408
    %v1085 = vunpack.c.0.s8 %v1084
    %v1086 = vlaneseq
    %v1087 = vshrl.u32 %v1086, 7
    %v1088 = vsub.s32 %v1085, %v1087
    %v1089 = vrot.slane %v1075, %v1088
    %v1090 = vcombine.low %v1058, %v1073
    %v1091 = vcombine.high %v1058, %v1073
    %v1093 = vunpack.c.l.s4 1934713408
    %v1094 = vunpack.c.0.s8 %v1093
    %v1095 = vlaneseq
    %v1096 = vshrl.u32 %v1095, 7
    %v1097 = vsub.s32 %v1094, %v1096
    %v1098 = vrot.slane %v1090, %v1097
    %v1100 = vunpack.c.l.s4 1934713408
    %v1101 = vunpack.c.0.s8 %v1100
    %v1102 = vlaneseq
    %v1103 = vshrl.u32 %v1102, 7
    %v1104 = vsub.s32 %v1101, %v1103
    %v1105 = vrot.slane %v1091, %v1104
    %v1106 = vcombine.high %v1082, 0
    %v1107 = vcombine.high %v1089, 0
    %v1108 = vcombine.high %v1098, 0
    %v1109 = vcombine.high %v1105, 0
    %v1110 = vcombine.low %v1016, %v1023
    %v1112 = vunpack.c.l.s4 1983009808
    %v1113 = vunpack.c.0.s8 %v1112
    %v1114 = vlaneseq
    %v1115 = vshrl.u32 %v1114, 7
    %v1116 = vsub.s32 %v1113, %v1115
    %v1117 = vrot.slane %v1110, %v1116
    %v1118 = vcombine.low %v1040, %v1041
    %v1120 = vunpack.c.l.s4 1983009808
    %v1121 = vunpack.c.0.s8 %v1120
    %v1122 = vlaneseq
    %v1123 = vshrl.u32 %v1122, 7
    %v1124 = vsub.s32 %v1121, %v1123
    %v1125 = vrot.slane %v1118, %v1124
    %v1126 = vcombine.low %v1032, %v1039
    %v1128 = vunpack.c.l.s4 1983009808
    %v1129 = vunpack.c.0.s8 %v1128
    %v1130 = vlaneseq
    %v1131 = vshrl.u32 %v1130, 7
    %v1132 = vsub.s32 %v1129, %v1131
    %v1133 = vrot.slane %v1126, %v1132
    %v1134 = vcombine.low %v1042, %v1043
    %v1136 = vunpack.c.l.s4 1983009808
    %v1137 = vunpack.c.0.s8 %v1136
    %v1138 = vlaneseq
    %v1139 = vshrl.u32 %v1138, 7
    %v1140 = vsub.s32 %v1137, %v1139
    %v1141 = vrot.slane %v1134, %v1140
    %v1142 = vcombine.low %v1117, %v1125
    %v1144 = vunpack.c.l.s4 1934713408
    %v1145 = vunpack.c.0.s8 %v1144
    %v1146 = vlaneseq
    %v1147 = vshrl.u32 %v1146, 7
    %v1148 = vsub.s32 %v1145, %v1147
    %v1149 = vrot.slane %v1142, %v1148
    %v1150 = vcombine.low %v1133, %v1141
    %v1152 = vunpack.c.l.s4 1934713408
    %v1153 = vunpack.c.0.s8 %v1152
    %v1154 = vlaneseq
    %v1155 = vshrl.u32 %v1154, 7
    %v1156 = vsub.s32 %v1153, %v1155
    %v1157 = vrot.slane %v1150, %v1156
    %v1158 = vcombine.low %v1149, %v1157
    %v1159 = vcombine.high %v1149, %v1157
    %v1160 = vcombine.low %v1082, %v1089
    %v1162 = vunpack.c.l.s4 1983009808
    %v1163 = vunpack.c.0.s8 %v1162
    %v1164 = vlaneseq
    %v1165 = vshrl.u32 %v1164, 7
    %v1166 = vsub.s32 %v1163, %v1165
    %v1167 = vrot.slane %v1160, %v1166
    %v1168 = vcombine.low %v1106, %v1107
    %v1170 = vunpack.c.l.s4 1983009808
    %v1171 = vunpack.c.0.s8 %v1170
    %v1172 = vlaneseq
    %v1173 = vshrl.u32 %v1172, 7
    %v1174 = vsub.s32 %v1171, %v1173
    %v1175 = vrot.slane %v1168, %v1174
    %v1176 = vcombine.low %v1098, %v1105
    %v1178 = vunpack.c.l.s4 1983009808
    %v1179 = vunpack.c.0.s8 %v1178
    %v1180 = vlaneseq
    %v1181 = vshrl.u32 %v1180, 7
    %v1182 = vsub.s32 %v1179, %v1181
    %v1183 = vrot.slane %v1176, %v1182
    %v1184 = vcombine.low %v1108, %v1109
    %v1186 = vunpack.c.l.s4 1983009808
    %v1187 = vunpack.c.0.s8 %v1186
    %v1188 = vlaneseq
    %v1189 = vshrl.u32 %v1188, 7
    %v1190 = vsub.s32 %v1187, %v1189
    %v1191 = vrot.slane %v1184, %v1190
    %v1192 = vcombine.low %v1167, %v1175
    %v1194 = vunpack.c.l.s4 1934713408
    %v1195 = vunpack.c.0.s8 %v1194
    %v1196 = vlaneseq
    %v1197 = vshrl.u32 %v1196, 7
    %v1198 = vsub.s32 %v1195, %v1197
    %v1199 = vrot.slane %v1192, %v1198
    %v1200 = vcombine.low %v1183, %v1191
    %v1202 = vunpack.c.l.s4 1934713408
    %v1203 = vunpack.c.0.s8 %v1202
    %v1204 = vlaneseq
    %v1205 = vshrl.u32 %v1204, 7
    %v1206 = vsub.s32 %v1203, %v1205
    %v1207 = vrot.slane %v1200, %v1206
    %v1208 = vcombine.low %v1199, %v1207
    %v1209 = vcombine.high %v1199, %v1207
    %v1212 = vpack.i.b16 %v1208, %v1158
    %v1213 = vshrl.u32 %v1158, 16
    %v1214 = vshrl.u32 %v1208, 16
    %v1215 = vpack.i.b16 %v1214, %v1213
    %v1218 = vpack.i.b16 %v1209, %v1159
    %v1219 = vshrl.u32 %v1159, 16
    %v1220 = vshrl.u32 %v1209, 16
    %v1221 = vpack.i.b16 %v1220, %v1219
    %v1222 = vunpack.c.l.b16 %v1212
    %v1223 = vunpack.c.h.b16 %v1212
    %v1224 = vunpack.c.l.b16 %v1215
    %v1225 = vunpack.c.h.b16 %v1215
    %v1226 = vunpack.c.l.b16 %v1218
    %v1227 = vunpack.c.h.b16 %v1218
    %v1228 = vunpack.c.l.b16 %v1221
    %v1229 = vunpack.c.h.b16 %v1221
    %v1230 = vpack.c.b16 %v1222, %v1222
    %v1231 = vpack.c.b16 %v1223, %v1223
    %v1232 = vpack.c.b16 %v1224, %v1224
    %v1233 = vpack.c.b16 %v1225, %v1225
    %v1234 = vpack.c.b16 %v1226, %v1226
    %v1235 = vpack.c.b16 %v1227, %v1227
    %v1236 = vpack.c.b16 %v1228, %v1228
    %v1237 = vpack.c.b16 %v1229, %v1229
    %v1238 = vld [vmem:[#allocation2] sm:$0xf]
    %v1239 = vld [vmem:[#allocation2 + $0x4] sm:$0xf]
    %v1240 = vld [vmem:[#allocation2 + $0x8] sm:$0xf]
    %v1241 = vld [vmem:[#allocation2 + $0xc] sm:$0xf]
    %v1242 = vld [vmem:[#allocation2 + $0x10] sm:$0xf]
    %v1243 = vld [vmem:[#allocation2 + $0x14] sm:$0xf]
    %v1244 = vld [vmem:[#allocation2 + $0x18] sm:$0xf]
    %v1245 = vld [vmem:[#allocation2 + $0x1c] sm:$0xf]
    %vm1246 = vcmask 64512
    %v1248 = vsel %vm1246, %v1238, 0
    %v1251 = vsel %vm1246, %v946, 0
    %1253 = vmatprep.subr.bf16.mxu0 0
    %1254 = vmatpush1.bf16.xpose.msra.mxu0 %v1251
    %1255 = vmatprep.subr.bf16.mxu0 0
    %1256 = vmatpush1.bf16.xpose.msra.mxu0 0
    %1257 = vmatprep.subr.bf16.mxu0 0
    %1258 = vmatpush1.bf16.xpose.msra.mxu0 0
    %1259 = vmatprep.subr.bf16.mxu0 0
    %1260 = vmatpush1.bf16.xpose.msra.mxu0 0
    %1261 = vmatprep.subr.bf16.mxu0 0
    %1262 = vmatpush1.bf16.xpose.msra.mxu0 0
    %1263 = vmatprep.subr.bf16.mxu0 0
    %1264 = vmatpush1.bf16.xpose.msra.mxu0 0
    %1265 = vmatprep.subr.bf16.mxu0 0
    %1266 = vmatpush1.bf16.xpose.msra.mxu0 0
    %1267 = vmatprep.subr.bf16.mxu0 0
    %1268 = vmatpush1.bf16.xpose.msra.mxu0 0
    %1269 = vmatprep.subr.bf16.mxu0 0
    %1270 = vmatpush1.bf16.xpose.msra.mxu0 0
    %1271 = vmatprep.subr.bf16.mxu0 0
    %1272 = vmatpush1.bf16.xpose.msra.mxu0 0
    %1273 = vmatprep.subr.bf16.mxu0 0
    %1274 = vmatpush1.bf16.xpose.msra.mxu0 0
    %1275 = vmatprep.subr.bf16.mxu0 0
    %1276 = vmatpush1.bf16.xpose.msra.mxu0 0
    %1277 = vmatprep.subr.bf16.mxu0 0
    %1278 = vmatpush1.bf16.xpose.msra.mxu0 0
    %1279 = vmatprep.subr.bf16.mxu0 0
    %1280 = vmatpush1.bf16.xpose.msra.mxu0 0
    %1281 = vmatprep.subr.bf16.mxu0 0
    %1282 = vmatpush1.bf16.xpose.msra.mxu0 0
    %1283 = vmatprep.subr.bf16.mxu0 0
    %1284 = vmatpush1.bf16.xpose.msra.mxu0 0
    %1285 = vmatprep.mubr.bf16.mxu0 0
    %1286 = vmatmul.mubr.bf16.gmra.mrb[0].mxu0 %v1248
    %v1287 = vpop.f32.mrb[0].mxu0
    %v1288 = vadd.f32 0.0, %v1287
    %v1289 = vpop.f32.mrb[0].mxu0
    %v1290 = vpop.f32.mrb[0].mxu0
    %v1291 = vpop.f32.mrb[0].mxu0
    %1292 = vdwg.mxu0
    %v1294 = vsel %vm1246, %v1239, 0
    %v1297 = vsel %vm1246, %v947, 0
    %1299 = vmatprep.subr.bf16.mxu0 0
    %1300 = vmatpush1.bf16.xpose.msra.mxu0 %v1297
    %1301 = vmatprep.subr.bf16.mxu0 0
    %1302 = vmatpush1.bf16.xpose.msra.mxu0 0
    %1303 = vmatprep.subr.bf16.mxu0 0
    %1304 = vmatpush1.bf16.xpose.msra.mxu0 0
    %1305 = vmatprep.subr.bf16.mxu0 0
    %1306 = vmatpush1.bf16.xpose.msra.mxu0 0
    %1307 = vmatprep.subr.bf16.mxu0 0
    %1308 = vmatpush1.bf16.xpose.msra.mxu0 0
    %1309 = vmatprep.subr.bf16.mxu0 0
    %1310 = vmatpush1.bf16.xpose.msra.mxu0 0
    %1311 = vmatprep.subr.bf16.mxu0 0
    %1312 = vmatpush1.bf16.xpose.msra.mxu0 0
    %1313 = vmatprep.subr.bf16.mxu0 0
    %1314 = vmatpush1.bf16.xpose.msra.mxu0 0
    %1315 = vmatprep.subr.bf16.mxu0 0
    %1316 = vmatpush1.bf16.xpose.msra.mxu0 0
    %1317 = vmatprep.subr.bf16.mxu0 0
    %1318 = vmatpush1.bf16.xpose.msra.mxu0 0
    %1319 = vmatprep.subr.bf16.mxu0 0
    %1320 = vmatpush1.bf16.xpose.msra.mxu0 0
    %1321 = vmatprep.subr.bf16.mxu0 0
    %1322 = vmatpush1.bf16.xpose.msra.mxu0 0
    %1323 = vmatprep.subr.bf16.mxu0 0
    %1324 = vmatpush1.bf16.xpose.msra.mxu0 0
    %1325 = vmatprep.subr.bf16.mxu0 0
    %1326 = vmatpush1.bf16.xpose.msra.mxu0 0
    %1327 = vmatprep.subr.bf16.mxu0 0
    %1328 = vmatpush1.bf16.xpose.msra.mxu0 0
    %1329 = vmatprep.subr.bf16.mxu0 0
    %1330 = vmatpush1.bf16.xpose.msra.mxu0 0
    %1331 = vmatprep.mubr.bf16.mxu0 0
    %1332 = vmatmul.mubr.bf16.gmra.mrb[0].mxu0 %v1294
    %v1333 = vpop.f32.mrb[0].mxu0
    %v1334 = vadd.f32 0.0, %v1333
    %v1335 = vpop.f32.mrb[0].mxu0
    %v1336 = vpop.f32.mrb[0].mxu0
    %v1337 = vpop.f32.mrb[0].mxu0
    %1338 = vdwg.mxu0
    %v1340 = vsel %vm1246, %v1240, 0
    %v1343 = vsel %vm1246, %v948, 0
    %1345 = vmatprep.subr.bf16.mxu0 0
    %1346 = vmatpush1.bf16.xpose.msra.mxu0 %v1343
    %1347 = vmatprep.subr.bf16.mxu0 0
    %1348 = vmatpush1.bf16.xpose.msra.mxu0 0
    %1349 = vmatprep.subr.bf16.mxu0 0
    %1350 = vmatpush1.bf16.xpose.msra.mxu0 0
    %1351 = vmatprep.subr.bf16.mxu0 0
    %1352 = vmatpush1.bf16.xpose.msra.mxu0 0
    %1353 = vmatprep.subr.bf16.mxu0 0
    %1354 = vmatpush1.bf16.xpose.msra.mxu0 0
    %1355 = vmatprep.subr.bf16.mxu0 0
    %1356 = vmatpush1.bf16.xpose.msra.mxu0 0
    %1357 = vmatprep.subr.bf16.mxu0 0
    %1358 = vmatpush1.bf16.xpose.msra.mxu0 0
    %1359 = vmatprep.subr.bf16.mxu0 0
    %1360 = vmatpush1.bf16.xpose.msra.mxu0 0
    %1361 = vmatprep.subr.bf16.mxu0 0
    %1362 = vmatpush1.bf16.xpose.msra.mxu0 0
    %1363 = vmatprep.subr.bf16.mxu0 0
    %1364 = vmatpush1.bf16.xpose.msra.mxu0 0
    %1365 = vmatprep.subr.bf16.mxu0 0
    %1366 = vmatpush1.bf16.xpose.msra.mxu0 0
    %1367 = vmatprep.subr.bf16.mxu0 0
    %1368 = vmatpush1.bf16.xpose.msra.mxu0 0
    %1369 = vmatprep.subr.bf16.mxu0 0
    %1370 = vmatpush1.bf16.xpose.msra.mxu0 0
    %1371 = vmatprep.subr.bf16.mxu0 0
    %1372 = vmatpush1.bf16.xpose.msra.mxu0 0
    %1373 = vmatprep.subr.bf16.mxu0 0
    %1374 = vmatpush1.bf16.xpose.msra.mxu0 0
    %1375 = vmatprep.subr.bf16.mxu0 0
    %1376 = vmatpush1.bf16.xpose.msra.mxu0 0
    %1377 = vmatprep.mubr.bf16.mxu0 0
    %1378 = vmatmul.mubr.bf16.gmra.mrb[0].mxu0 %v1340
    %v1379 = vpop.f32.mrb[0].mxu0
    %v1380 = vadd.f32 0.0, %v1379
    %v1381 = vpop.f32.mrb[0].mxu0
    %v1382 = vpop.f32.mrb[0].mxu0
    %v1383 = vpop.f32.mrb[0].mxu0
    %1384 = vdwg.mxu0
    %v1386 = vsel %vm1246, %v1241, 0
    %v1389 = vsel %vm1246, %v949, 0
    %1391 = vmatprep.subr.bf16.mxu0 0
    %1392 = vmatpush1.bf16.xpose.msra.mxu0 %v1389
    %1393 = vmatprep.subr.bf16.mxu0 0
    %1394 = vmatpush1.bf16.xpose.msra.mxu0 0
    %1395 = vmatprep.subr.bf16.mxu0 0
    %1396 = vmatpush1.bf16.xpose.msra.mxu0 0
    %1397 = vmatprep.subr.bf16.mxu0 0
    %1398 = vmatpush1.bf16.xpose.msra.mxu0 0
    %1399 = vmatprep.subr.bf16.mxu0 0
    %1400 = vmatpush1.bf16.xpose.msra.mxu0 0
    %1401 = vmatprep.subr.bf16.mxu0 0
    %1402 = vmatpush1.bf16.xpose.msra.mxu0 0
    %1403 = vmatprep.subr.bf16.mxu0 0
    %1404 = vmatpush1.bf16.xpose.msra.mxu0 0
    %1405 = vmatprep.subr.bf16.mxu0 0
    %1406 = vmatpush1.bf16.xpose.msra.mxu0 0
    %1407 = vmatprep.subr.bf16.mxu0 0
    %1408 = vmatpush1.bf16.xpose.msra.mxu0 0
    %1409 = vmatprep.subr.bf16.mxu0 0
    %1410 = vmatpush1.bf16.xpose.msra.mxu0 0
    %1411 = vmatprep.subr.bf16.mxu0 0
    %1412 = vmatpush1.bf16.xpose.msra.mxu0 0
    %1413 = vmatprep.subr.bf16.mxu0 0
    %1414 = vmatpush1.bf16.xpose.msra.mxu0 0
    %1415 = vmatprep.subr.bf16.mxu0 0
    %1416 = vmatpush1.bf16.xpose.msra.mxu0 0
    %1417 = vmatprep.subr.bf16.mxu0 0
    %1418 = vmatpush1.bf16.xpose.msra.mxu0 0
    %1419 = vmatprep.subr.bf16.mxu0 0
    %1420 = vmatpush1.bf16.xpose.msra.mxu0 0
    %1421 = vmatprep.subr.bf16.mxu0 0
    %1422 = vmatpush1.bf16.xpose.msra.mxu0 0
    %1423 = vmatprep.mubr.bf16.mxu0 0
    %1424 = vmatmul.mubr.bf16.gmra.mrb[0].mxu0 %v1386
    %v1425 = vpop.f32.mrb[0].mxu0
    %v1426 = vadd.f32 0.0, %v1425
    %v1427 = vpop.f32.mrb[0].mxu0
    %v1428 = vpop.f32.mrb[0].mxu0
    %v1429 = vpop.f32.mrb[0].mxu0
    %1430 = vdwg.mxu0
    %v1432 = vsel %vm1246, %v1242, 0
    %v1435 = vsel %vm1246, %v950, 0
    %1437 = vmatprep.subr.bf16.mxu0 0
    %1438 = vmatpush1.bf16.xpose.msra.mxu0 %v1435
    %1439 = vmatprep.subr.bf16.mxu0 0
    %1440 = vmatpush1.bf16.xpose.msra.mxu0 0
    %1441 = vmatprep.subr.bf16.mxu0 0
    %1442 = vmatpush1.bf16.xpose.msra.mxu0 0
    %1443 = vmatprep.subr.bf16.mxu0 0
    %1444 = vmatpush1.bf16.xpose.msra.mxu0 0
    %1445 = vmatprep.subr.bf16.mxu0 0
    %1446 = vmatpush1.bf16.xpose.msra.mxu0 0
    %1447 = vmatprep.subr.bf16.mxu0 0
    %1448 = vmatpush1.bf16.xpose.msra.mxu0 0
    %1449 = vmatprep.subr.bf16.mxu0 0
    %1450 = vmatpush1.bf16.xpose.msra.mxu0 0
    %1451 = vmatprep.subr.bf16.mxu0 0
    %1452 = vmatpush1.bf16.xpose.msra.mxu0 0
    %1453 = vmatprep.subr.bf16.mxu0 0
    %1454 = vmatpush1.bf16.xpose.msra.mxu0 0
    %1455 = vmatprep.subr.bf16.mxu0 0
    %1456 = vmatpush1.bf16.xpose.msra.mxu0 0
    %1457 = vmatprep.subr.bf16.mxu0 0
    %1458 = vmatpush1.bf16.xpose.msra.mxu0 0
    %1459 = vmatprep.subr.bf16.mxu0 0
    %1460 = vmatpush1.bf16.xpose.msra.mxu0 0
    %1461 = vmatprep.subr.bf16.mxu0 0
    %1462 = vmatpush1.bf16.xpose.msra.mxu0 0
    %1463 = vmatprep.subr.bf16.mxu0 0
    %1464 = vmatpush1.bf16.xpose.msra.mxu0 0
    %1465 = vmatprep.subr.bf16.mxu0 0
    %1466 = vmatpush1.bf16.xpose.msra.mxu0 0
    %1467 = vmatprep.subr.bf16.mxu0 0
    %1468 = vmatpush1.bf16.xpose.msra.mxu0 0
    %1469 = vmatprep.mubr.bf16.mxu0 0
    %1470 = vmatmul.mubr.bf16.gmra.mrb[0].mxu0 %v1432
    %v1471 = vpop.f32.mrb[0].mxu0
    %v1472 = vadd.f32 0.0, %v1471
    %v1473 = vpop.f32.mrb[0].mxu0
    %v1474 = vpop.f32.mrb[0].mxu0
    %v1475 = vpop.f32.mrb[0].mxu0
    %1476 = vdwg.mxu0
    %v1478 = vsel %vm1246, %v1243, 0
    %v1481 = vsel %vm1246, %v951, 0
    %1483 = vmatprep.subr.bf16.mxu0 0
    %1484 = vmatpush1.bf16.xpose.msra.mxu0 %v1481
    %1485 = vmatprep.subr.bf16.mxu0 0
    %1486 = vmatpush1.bf16.xpose.msra.mxu0 0
    %1487 = vmatprep.subr.bf16.mxu0 0
    %1488 = vmatpush1.bf16.xpose.msra.mxu0 0
    %1489 = vmatprep.subr.bf16.mxu0 0
    %1490 = vmatpush1.bf16.xpose.msra.mxu0 0
    %1491 = vmatprep.subr.bf16.mxu0 0
    %1492 = vmatpush1.bf16.xpose.msra.mxu0 0
    %1493 = vmatprep.subr.bf16.mxu0 0
    %1494 = vmatpush1.bf16.xpose.msra.mxu0 0
    %1495 = vmatprep.subr.bf16.mxu0 0
    %1496 = vmatpush1.bf16.xpose.msra.mxu0 0
    %1497 = vmatprep.subr.bf16.mxu0 0
    %1498 = vmatpush1.bf16.xpose.msra.mxu0 0
    %1499 = vmatprep.subr.bf16.mxu0 0
    %1500 = vmatpush1.bf16.xpose.msra.mxu0 0
    %1501 = vmatprep.subr.bf16.mxu0 0
    %1502 = vmatpush1.bf16.xpose.msra.mxu0 0
    %1503 = vmatprep.subr.bf16.mxu0 0
    %1504 = vmatpush1.bf16.xpose.msra.mxu0 0
    %1505 = vmatprep.subr.bf16.mxu0 0
    %1506 = vmatpush1.bf16.xpose.msra.mxu0 0
    %1507 = vmatprep.subr.bf16.mxu0 0
    %1508 = vmatpush1.bf16.xpose.msra.mxu0 0
    %1509 = vmatprep.subr.bf16.mxu0 0
    %1510 = vmatpush1.bf16.xpose.msra.mxu0 0
    %1511 = vmatprep.subr.bf16.mxu0 0
    %1512 = vmatpush1.bf16.xpose.msra.mxu0 0
    %1513 = vmatprep.subr.bf16.mxu0 0
    %1514 = vmatpush1.bf16.xpose.msra.mxu0 0
    %1515 = vmatprep.mubr.bf16.mxu0 0
    %1516 = vmatmul.mubr.bf16.gmra.mrb[0].mxu0 %v1478
    %v1517 = vpop.f32.mrb[0].mxu0
    %v1518 = vadd.f32 0.0, %v1517
    %v1519 = vpop.f32.mrb[0].mxu0
    %v1520 = vpop.f32.mrb[0].mxu0
    %v1521 = vpop.f32.mrb[0].mxu0
    %1522 = vdwg.mxu0
    %v1524 = vsel %vm1246, %v1244, 0
    %v1527 = vsel %vm1246, %v952, 0
    %1529 = vmatprep.subr.bf16.mxu0 0
    %1530 = vmatpush1.bf16.xpose.msra.mxu0 %v1527
    %1531 = vmatprep.subr.bf16.mxu0 0
    %1532 = vmatpush1.bf16.xpose.msra.mxu0 0
    %1533 = vmatprep.subr.bf16.mxu0 0
    %1534 = vmatpush1.bf16.xpose.msra.mxu0 0
    %1535 = vmatprep.subr.bf16.mxu0 0
    %1536 = vmatpush1.bf16.xpose.msra.mxu0 0
    %1537 = vmatprep.subr.bf16.mxu0 0
    %1538 = vmatpush1.bf16.xpose.msra.mxu0 0
    %1539 = vmatprep.subr.bf16.mxu0 0
    %1540 = vmatpush1.bf16.xpose.msra.mxu0 0
    %1541 = vmatprep.subr.bf16.mxu0 0
    %1542 = vmatpush1.bf16.xpose.msra.mxu0 0
    %1543 = vmatprep.subr.bf16.mxu0 0
    %1544 = vmatpush1.bf16.xpose.msra.mxu0 0
    %1545 = vmatprep.subr.bf16.mxu0 0
    %1546 = vmatpush1.bf16.xpose.msra.mxu0 0
    %1547 = vmatprep.subr.bf16.mxu0 0
    %1548 = vmatpush1.bf16.xpose.msra.mxu0 0
    %1549 = vmatprep.subr.bf16.mxu0 0
    %1550 = vmatpush1.bf16.xpose.msra.mxu0 0
    %1551 = vmatprep.subr.bf16.mxu0 0
    %1552 = vmatpush1.bf16.xpose.msra.mxu0 0
    %1553 = vmatprep.subr.bf16.mxu0 0
    %1554 = vmatpush1.bf16.xpose.msra.mxu0 0
    %1555 = vmatprep.subr.bf16.mxu0 0
    %1556 = vmatpush1.bf16.xpose.msra.mxu0 0
    %1557 = vmatprep.subr.bf16.mxu0 0
    %1558 = vmatpush1.bf16.xpose.msra.mxu0 0
    %1559 = vmatprep.subr.bf16.mxu0 0
    %1560 = vmatpush1.bf16.xpose.msra.mxu0 0
    %1561 = vmatprep.mubr.bf16.mxu0 0
    %1562 = vmatmul.mubr.bf16.gmra.mrb[0].mxu0 %v1524
    %v1563 = vpop.f32.mrb[0].mxu0
    %v1564 = vadd.f32 0.0, %v1563
    %v1565 = vpop.f32.mrb[0].mxu0
    %v1566 = vpop.f32.mrb[0].mxu0
    %v1567 = vpop.f32.mrb[0].mxu0
    %1568 = vdwg.mxu0
    %v1570 = vsel %vm1246, %v1245, 0
    %v1573 = vsel %vm1246, %v953, 0
    %1575 = vmatprep.subr.bf16.mxu0 0
    %1576 = vmatpush1.bf16.xpose.msra.mxu0 %v1573
    %1577 = vmatprep.subr.bf16.mxu0 0
    %1578 = vmatpush1.bf16.xpose.msra.mxu0 0
    %1579 = vmatprep.subr.bf16.mxu0 0
    %1580 = vmatpush1.bf16.xpose.msra.mxu0 0
    %1581 = vmatprep.subr.bf16.mxu0 0
    %1582 = vmatpush1.bf16.xpose.msra.mxu0 0
    %1583 = vmatprep.subr.bf16.mxu0 0
    %1584 = vmatpush1.bf16.xpose.msra.mxu0 0
    %1585 = vmatprep.subr.bf16.mxu0 0
    %1586 = vmatpush1.bf16.xpose.msra.mxu0 0
    %1587 = vmatprep.subr.bf16.mxu0 0
    %1588 = vmatpush1.bf16.xpose.msra.mxu0 0
    %1589 = vmatprep.subr.bf16.mxu0 0
    %1590 = vmatpush1.bf16.xpose.msra.mxu0 0
    %1591 = vmatprep.subr.bf16.mxu0 0
    %1592 = vmatpush1.bf16.xpose.msra.mxu0 0
    %1593 = vmatprep.subr.bf16.mxu0 0
    %1594 = vmatpush1.bf16.xpose.msra.mxu0 0
    %1595 = vmatprep.subr.bf16.mxu0 0
    %1596 = vmatpush1.bf16.xpose.msra.mxu0 0
    %1597 = vmatprep.subr.bf16.mxu0 0
    %1598 = vmatpush1.bf16.xpose.msra.mxu0 0
    %1599 = vmatprep.subr.bf16.mxu0 0
    %1600 = vmatpush1.bf16.xpose.msra.mxu0 0
    %1601 = vmatprep.subr.bf16.mxu0 0
    %1602 = vmatpush1.bf16.xpose.msra.mxu0 0
    %1603 = vmatprep.subr.bf16.mxu0 0
    %1604 = vmatpush1.bf16.xpose.msra.mxu0 0
    %1605 = vmatprep.subr.bf16.mxu0 0
    %1606 = vmatpush1.bf16.xpose.msra.mxu0 0
    %1607 = vmatprep.mubr.bf16.mxu0 0
    %1608 = vmatmul.mubr.bf16.gmra.mrb[0].mxu0 %v1570
    %v1609 = vpop.f32.mrb[0].mxu0
    %v1610 = vadd.f32 0.0, %v1609
    %v1611 = vpop.f32.mrb[0].mxu0
    %v1612 = vpop.f32.mrb[0].mxu0
    %v1613 = vpop.f32.mrb[0].mxu0
    %1614 = vdwg.mxu0
    %v1615 = vld [vmem:[#allocation3] sm:$0xff]
    %v1616 = vld [vmem:[#allocation3 + $0x8] sm:$0xff]
    %v1617 = vld [vmem:[#allocation3 + $0x10] sm:$0xff]
    %v1618 = vld [vmem:[#allocation3 + $0x18] sm:$0xff]
    %v1619 = vld [vmem:[#allocation3 + $0x20] sm:$0xff]
    %v1620 = vld [vmem:[#allocation3 + $0x28] sm:$0xff]
    %v1621 = vld [vmem:[#allocation3 + $0x30] sm:$0xff]
    %v1622 = vld [vmem:[#allocation3 + $0x38] sm:$0xff]
    %v1623 = vsel %vm1246, %v1288, -inf
    %1624 = vmax.xlane.f32.xlu0 %v1623
    %v1625 = vpop.xlane.xlu0 %1624
    %v1626 = vsel %vm1246, %v1334, -inf
    %1627 = vmax.xlane.f32.xlu0 %v1626
    %v1628 = vpop.xlane.xlu0 %1627
    %v1629 = vsel %vm1246, %v1380, -inf
    %1630 = vmax.xlane.f32.xlu0 %v1629
    %v1631 = vpop.xlane.xlu0 %1630
    %v1632 = vsel %vm1246, %v1426, -inf
    %1633 = vmax.xlane.f32.xlu0 %v1632
    %v1634 = vpop.xlane.xlu0 %1633
    %v1635 = vsel %vm1246, %v1472, -inf
    %1636 = vmax.xlane.f32.xlu0 %v1635
    %v1637 = vpop.xlane.xlu0 %1636
    %v1638 = vsel %vm1246, %v1518, -inf
    %1639 = vmax.xlane.f32.xlu0 %v1638
    %v1640 = vpop.xlane.xlu0 %1639
    %v1641 = vsel %vm1246, %v1564, -inf
    %1642 = vmax.xlane.f32.xlu0 %v1641
    %v1643 = vpop.xlane.xlu0 %1642
    %v1644 = vsel %vm1246, %v1610, -inf
    %1645 = vmax.xlane.f32.xlu0 %v1644
    %v1646 = vpop.xlane.xlu0 %1645
    %v1647 = vmax.f32 %v1615, %v1625
    %v1648 = vmax.f32 %v1616, %v1628
    %v1649 = vmax.f32 %v1617, %v1631
    %v1650 = vmax.f32 %v1618, %v1634
    %v1651 = vmax.f32 %v1619, %v1637
    %v1652 = vmax.f32 %v1620, %v1640
    %v1653 = vmax.f32 %v1621, %v1643
    %v1654 = vmax.f32 %v1622, %v1646
    %v1655 = vsub.f32 %v1615, %v1647
    %v1656 = vsub.f32 %v1616, %v1648
    %v1657 = vsub.f32 %v1617, %v1649
    %v1658 = vsub.f32 %v1618, %v1650
    %v1659 = vsub.f32 %v1619, %v1651
    %v1660 = vsub.f32 %v1620, %v1652
    %v1661 = vsub.f32 %v1621, %v1653
    %v1662 = vsub.f32 %v1622, %v1654
    %v1663 = vmul.f32 %v1655, 1.442695
    %v1664 = vpow.pop %v1663
    %v1665 = vmul.f32 %v1656, 1.442695
    %v1666 = vpow.pop %v1665
    %v1667 = vmul.f32 %v1657, 1.442695
    %v1668 = vpow.pop %v1667
    %v1669 = vmul.f32 %v1658, 1.442695
    %v1670 = vpow.pop %v1669
    %v1671 = vmul.f32 %v1659, 1.442695
    %v1672 = vpow.pop %v1671
    %v1673 = vmul.f32 %v1660, 1.442695
    %v1674 = vpow.pop %v1673
    %v1675 = vmul.f32 %v1661, 1.442695
    %v1676 = vpow.pop %v1675
    %v1677 = vmul.f32 %v1662, 1.442695
    %v1678 = vpow.pop %v1677
    %1680 = vset.pattern.permute.xlu0 0
    %1681 = vperm.xlu0 %1680, %v1647
    %v1682 = vpop.permute.xlu0 %1681
    %1685 = vset.pattern.permute.xlu0 0
    %1686 = vperm.xlu0 %1685, %v1648
    %v1687 = vpop.permute.xlu0 %1686
    %1690 = vset.pattern.permute.xlu0 0
    %1691 = vperm.xlu0 %1690, %v1649
    %v1692 = vpop.permute.xlu0 %1691
    %1695 = vset.pattern.permute.xlu0 0
    %1696 = vperm.xlu0 %1695, %v1650
    %v1697 = vpop.permute.xlu0 %1696
    %1700 = vset.pattern.permute.xlu0 0
    %1701 = vperm.xlu0 %1700, %v1651
    %v1702 = vpop.permute.xlu0 %1701
    %1705 = vset.pattern.permute.xlu0 0
    %1706 = vperm.xlu0 %1705, %v1652
    %v1707 = vpop.permute.xlu0 %1706
    %1710 = vset.pattern.permute.xlu0 0
    %1711 = vperm.xlu0 %1710, %v1653
    %v1712 = vpop.permute.xlu0 %1711
    %1715 = vset.pattern.permute.xlu0 0
    %1716 = vperm.xlu0 %1715, %v1654
    %v1717 = vpop.permute.xlu0 %1716
    %v1719 = vsub.f32 %v1288, %v1682
    %v1720 = vsub.f32 %v1334, %v1687
    %v1721 = vsub.f32 %v1380, %v1692
    %v1722 = vsub.f32 %v1426, %v1697
    %v1723 = vsub.f32 %v1472, %v1702
    %v1724 = vsub.f32 %v1518, %v1707
    %v1725 = vsub.f32 %v1564, %v1712
    %v1726 = vsub.f32 %v1610, %v1717
    %v1727 = vmul.f32 %v1719, 1.442695
    %v1728 = vpow.pop %v1727
    %v1729 = vmul.f32 %v1720, 1.442695
    %v1730 = vpow.pop %v1729
    %v1731 = vmul.f32 %v1721, 1.442695
    %v1732 = vpow.pop %v1731
    %v1733 = vmul.f32 %v1722, 1.442695
    %v1734 = vpow.pop %v1733
    %v1735 = vmul.f32 %v1723, 1.442695
    %v1736 = vpow.pop %v1735
    %v1737 = vmul.f32 %v1724, 1.442695
    %v1738 = vpow.pop %v1737
    %v1739 = vmul.f32 %v1725, 1.442695
    %v1740 = vpow.pop %v1739
    %v1741 = vmul.f32 %v1726, 1.442695
    %v1742 = vpow.pop %v1741
    %v1743 = vld [vmem:[#allocation4] sm:$0xff]
    %v1744 = vld [vmem:[#allocation4 + $0x8] sm:$0xff]
    %v1745 = vld [vmem:[#allocation4 + $0x10] sm:$0xff]
    %v1746 = vld [vmem:[#allocation4 + $0x18] sm:$0xff]
    %v1747 = vld [vmem:[#allocation4 + $0x20] sm:$0xff]
    %v1748 = vld [vmem:[#allocation4 + $0x28] sm:$0xff]
    %v1749 = vld [vmem:[#allocation4 + $0x30] sm:$0xff]
    %v1750 = vld [vmem:[#allocation4 + $0x38] sm:$0xff]
    %v1751 = vmul.f32 %v1664, %v1743
    %v1752 = vmul.f32 %v1666, %v1744
    %v1753 = vmul.f32 %v1668, %v1745
    %v1754 = vmul.f32 %v1670, %v1746
    %v1755 = vmul.f32 %v1672, %v1747
    %v1756 = vmul.f32 %v1674, %v1748
    %v1757 = vmul.f32 %v1676, %v1749
    %v1758 = vmul.f32 %v1678, %v1750
    %v1759 = vsel %vm1246, %v1728, 0.0
    %1760 = vadd.xlane.f32.xlu0 %v1759
    %v1761 = vpop.xlane.xlu0 %1760
    %v1762 = vsel %vm1246, %v1730, 0.0
    %1763 = vadd.xlane.f32.xlu0 %v1762
    %v1764 = vpop.xlane.xlu0 %1763
    %v1765 = vsel %vm1246, %v1732, 0.0
    %1766 = vadd.xlane.f32.xlu0 %v1765
    %v1767 = vpop.xlane.xlu0 %1766
    %v1768 = vsel %vm1246, %v1734, 0.0
    %1769 = vadd.xlane.f32.xlu0 %v1768
    %v1770 = vpop.xlane.xlu0 %1769
    %v1771 = vsel %vm1246, %v1736, 0.0
    %1772 = vadd.xlane.f32.xlu0 %v1771
    %v1773 = vpop.xlane.xlu0 %1772
    %v1774 = vsel %vm1246, %v1738, 0.0
    %1775 = vadd.xlane.f32.xlu0 %v1774
    %v1776 = vpop.xlane.xlu0 %1775
    %v1777 = vsel %vm1246, %v1740, 0.0
    %1778 = vadd.xlane.f32.xlu0 %v1777
    %v1779 = vpop.xlane.xlu0 %1778
    %v1780 = vsel %vm1246, %v1742, 0.0
    %1781 = vadd.xlane.f32.xlu0 %v1780
    %v1782 = vpop.xlane.xlu0 %1781
    %v1783 = vadd.f32 %v1751, %v1761
    %v1784 = vadd.f32 %v1752, %v1764
    %v1785 = vadd.f32 %v1753, %v1767
    %v1786 = vadd.f32 %v1754, %v1770
    %v1787 = vadd.f32 %v1755, %v1773
    %v1788 = vadd.f32 %v1756, %v1776
    %v1789 = vadd.f32 %v1757, %v1779
    %v1790 = vadd.f32 %v1758, %v1782
    %vm1791 = vcmask 7168
    %1792 = vst.msk [vmem:[#allocation4] sm:$0xff] %vm1791, %v1783
    %1793 = vst.msk [vmem:[#allocation4 + $0x8] sm:$0xff] %vm1791, %v1784
    %1794 = vst.msk [vmem:[#allocation4 + $0x10] sm:$0xff] %vm1791, %v1785
    %1795 = vst.msk [vmem:[#allocation4 + $0x18] sm:$0xff] %vm1791, %v1786
    %1796 = vst.msk [vmem:[#allocation4 + $0x20] sm:$0xff] %vm1791, %v1787
    %1797 = vst.msk [vmem:[#allocation4 + $0x28] sm:$0xff] %vm1791, %v1788
    %1798 = vst.msk [vmem:[#allocation4 + $0x30] sm:$0xff] %vm1791, %v1789
    %1799 = vst.msk [vmem:[#allocation4 + $0x38] sm:$0xff] %vm1791, %v1790
    %v1800 = vld [vmem:[#allocation5] sm:$0xff]
    %v1801 = vld [vmem:[#allocation5 + $0x8] sm:$0xff]
    %v1802 = vld [vmem:[#allocation5 + $0x10] sm:$0xff]
    %v1803 = vld [vmem:[#allocation5 + $0x18] sm:$0xff]
    %v1804 = vld [vmem:[#allocation5 + $0x20] sm:$0xff]
    %v1805 = vld [vmem:[#allocation5 + $0x28] sm:$0xff]
    %v1806 = vld [vmem:[#allocation5 + $0x30] sm:$0xff]
    %v1807 = vld [vmem:[#allocation5 + $0x38] sm:$0xff]
    %1809 = vset.pattern.permute.xlu0 0
    %1810 = vperm.xlu0 %1809, %v1664
    %v1811 = vpop.permute.xlu0 %1810
    %1814 = vset.pattern.permute.xlu0 0
    %1815 = vperm.xlu0 %1814, %v1666
    %v1816 = vpop.permute.xlu0 %1815
    %1819 = vset.pattern.permute.xlu0 0
    %1820 = vperm.xlu0 %1819, %v1668
    %v1821 = vpop.permute.xlu0 %1820
    %1824 = vset.pattern.permute.xlu0 0
    %1825 = vperm.xlu0 %1824, %v1670
    %v1826 = vpop.permute.xlu0 %1825
    %1829 = vset.pattern.permute.xlu0 0
    %1830 = vperm.xlu0 %1829, %v1672
    %v1831 = vpop.permute.xlu0 %1830
    %1834 = vset.pattern.permute.xlu0 0
    %1835 = vperm.xlu0 %1834, %v1674
    %v1836 = vpop.permute.xlu0 %1835
    %1839 = vset.pattern.permute.xlu0 0
    %1840 = vperm.xlu0 %1839, %v1676
    %v1841 = vpop.permute.xlu0 %1840
    %1844 = vset.pattern.permute.xlu0 0
    %1845 = vperm.xlu0 %1844, %v1678
    %v1846 = vpop.permute.xlu0 %1845
    %v1848 = vmul.f32 %v1811, %v1800
    %v1849 = vmul.f32 %v1816, %v1801
    %v1850 = vmul.f32 %v1821, %v1802
    %v1851 = vmul.f32 %v1826, %v1803
    %v1852 = vmul.f32 %v1831, %v1804
    %v1853 = vmul.f32 %v1836, %v1805
    %v1854 = vmul.f32 %v1841, %v1806
    %v1855 = vmul.f32 %v1846, %v1807
    %v1856 = vpack.c.bf16 %v1728, %v1728
    %v1857 = vpack.c.bf16 %v1730, %v1730
    %v1858 = vpack.c.bf16 %v1732, %v1732
    %v1859 = vpack.c.bf16 %v1734, %v1734
    %v1860 = vpack.c.bf16 %v1736, %v1736
    %v1861 = vpack.c.bf16 %v1738, %v1738
    %v1862 = vpack.c.bf16 %v1740, %v1740
    %v1863 = vpack.c.bf16 %v1742, %v1742
    %v1865 = vsel %vm1246, %v1856, 0
    %vm1867 = vcmask 1043456
    %v1869 = vsel %vm1867, %v1230, 0
    %1871 = vmatprep.subr.bf16.mxu0 0
    %1872 = vmatpush1.bf16.msra.mxu0 %v1869
    %1873 = vmatprep.subr.bf16.mxu0 0
    %1874 = vmatpush1.bf16.msra.mxu0 0
    %1875 = vmatprep.subr.bf16.mxu0 0
    %1876 = vmatpush1.bf16.msra.mxu0 0
    %1877 = vmatprep.subr.bf16.mxu0 0
    %1878 = vmatpush1.bf16.msra.mxu0 0
    %1879 = vmatprep.subr.bf16.mxu0 0
    %1880 = vmatpush1.bf16.msra.mxu0 0
    %1881 = vmatprep.subr.bf16.mxu0 0
    %1882 = vmatpush1.bf16.msra.mxu0 0
    %1883 = vmatprep.subr.bf16.mxu0 0
    %1884 = vmatpush1.bf16.msra.mxu0 0
    %1885 = vmatprep.subr.bf16.mxu0 0
    %1886 = vmatpush1.bf16.msra.mxu0 0
    %1887 = vmatprep.subr.bf16.mxu0 0
    %1888 = vmatpush1.bf16.msra.mxu0 0
    %1889 = vmatprep.subr.bf16.mxu0 0
    %1890 = vmatpush1.bf16.msra.mxu0 0
    %1891 = vmatprep.subr.bf16.mxu0 0
    %1892 = vmatpush1.bf16.msra.mxu0 0
    %1893 = vmatprep.subr.bf16.mxu0 0
    %1894 = vmatpush1.bf16.msra.mxu0 0
    %1895 = vmatprep.subr.bf16.mxu0 0
    %1896 = vmatpush1.bf16.msra.mxu0 0
    %1897 = vmatprep.subr.bf16.mxu0 0
    %1898 = vmatpush1.bf16.msra.mxu0 0
    %1899 = vmatprep.subr.bf16.mxu0 0
    %1900 = vmatpush1.bf16.msra.mxu0 0
    %1901 = vmatprep.subr.bf16.mxu0 0
    %1902 = vmatpush1.bf16.msra.mxu0 0
    %1903 = vmatprep.mubr.bf16.mxu0 0
    %1904 = vmatmul.mubr.bf16.gmra.mrb[0].mxu0 %v1865
    %v1905 = vpop.f32.mrb[0].mxu0
    %v1906 = vadd.f32 0.0, %v1905
    %v1907 = vpop.f32.mrb[0].mxu0
    %v1908 = vpop.f32.mrb[0].mxu0
    %v1909 = vpop.f32.mrb[0].mxu0
    %1910 = vdwg.mxu0
    %v1912 = vsel %vm1246, %v1857, 0
    %v1915 = vsel %vm1867, %v1231, 0
    %1917 = vmatprep.subr.bf16.mxu0 0
    %1918 = vmatpush1.bf16.msra.mxu0 %v1915
    %1919 = vmatprep.subr.bf16.mxu0 0
    %1920 = vmatpush1.bf16.msra.mxu0 0
    %1921 = vmatprep.subr.bf16.mxu0 0
    %1922 = vmatpush1.bf16.msra.mxu0 0
    %1923 = vmatprep.subr.bf16.mxu0 0
    %1924 = vmatpush1.bf16.msra.mxu0 0
    %1925 = vmatprep.subr.bf16.mxu0 0
    %1926 = vmatpush1.bf16.msra.mxu0 0
    %1927 = vmatprep.subr.bf16.mxu0 0
    %1928 = vmatpush1.bf16.msra.mxu0 0
    %1929 = vmatprep.subr.bf16.mxu0 0
    %1930 = vmatpush1.bf16.msra.mxu0 0
    %1931 = vmatprep.subr.bf16.mxu0 0
    %1932 = vmatpush1.bf16.msra.mxu0 0
    %1933 = vmatprep.subr.bf16.mxu0 0
    %1934 = vmatpush1.bf16.msra.mxu0 0
    %1935 = vmatprep.subr.bf16.mxu0 0
    %1936 = vmatpush1.bf16.msra.mxu0 0
    %1937 = vmatprep.subr.bf16.mxu0 0
    %1938 = vmatpush1.bf16.msra.mxu0 0
    %1939 = vmatprep.subr.bf16.mxu0 0
    %1940 = vmatpush1.bf16.msra.mxu0 0
    %1941 = vmatprep.subr.bf16.mxu0 0
    %1942 = vmatpush1.bf16.msra.mxu0 0
    %1943 = vmatprep.subr.bf16.mxu0 0
    %1944 = vmatpush1.bf16.msra.mxu0 0
    %1945 = vmatprep.subr.bf16.mxu0 0
    %1946 = vmatpush1.bf16.msra.mxu0 0
    %1947 = vmatprep.subr.bf16.mxu0 0
    %1948 = vmatpush1.bf16.msra.mxu0 0
    %1949 = vmatprep.mubr.bf16.mxu0 0
    %1950 = vmatmul.mubr.bf16.gmra.mrb[0].mxu0 %v1912
    %v1951 = vpop.f32.mrb[0].mxu0
    %v1952 = vadd.f32 0.0, %v1951
    %v1953 = vpop.f32.mrb[0].mxu0
    %v1954 = vpop.f32.mrb[0].mxu0
    %v1955 = vpop.f32.mrb[0].mxu0
    %1956 = vdwg.mxu0
    %v1958 = vsel %vm1246, %v1858, 0
    %v1961 = vsel %vm1867, %v1232, 0
    %1963 = vmatprep.subr.bf16.mxu0 0
    %1964 = vmatpush1.bf16.msra.mxu0 %v1961
    %1965 = vmatprep.subr.bf16.mxu0 0
    %1966 = vmatpush1.bf16.msra.mxu0 0
    %1967 = vmatprep.subr.bf16.mxu0 0
    %1968 = vmatpush1.bf16.msra.mxu0 0
    %1969 = vmatprep.subr.bf16.mxu0 0
    %1970 = vmatpush1.bf16.msra.mxu0 0
    %1971 = vmatprep.subr.bf16.mxu0 0
    %1972 = vmatpush1.bf16.msra.mxu0 0
    %1973 = vmatprep.subr.bf16.mxu0 0
    %1974 = vmatpush1.bf16.msra.mxu0 0
    %1975 = vmatprep.subr.bf16.mxu0 0
    %1976 = vmatpush1.bf16.msra.mxu0 0
    %1977 = vmatprep.subr.bf16.mxu0 0
    %1978 = vmatpush1.bf16.msra.mxu0 0
    %1979 = vmatprep.subr.bf16.mxu0 0
    %1980 = vmatpush1.bf16.msra.mxu0 0
    %1981 = vmatprep.subr.bf16.mxu0 0
    %1982 = vmatpush1.bf16.msra.mxu0 0
    %1983 = vmatprep.subr.bf16.mxu0 0
    %1984 = vmatpush1.bf16.msra.mxu0 0
    %1985 = vmatprep.subr.bf16.mxu0 0
    %1986 = vmatpush1.bf16.msra.mxu0 0
    %1987 = vmatprep.subr.bf16.mxu0 0
    %1988 = vmatpush1.bf16.msra.mxu0 0
    %1989 = vmatprep.subr.bf16.mxu0 0
    %1990 = vmatpush1.bf16.msra.mxu0 0
    %1991 = vmatprep.subr.bf16.mxu0 0
    %1992 = vmatpush1.bf16.msra.mxu0 0
    %1993 = vmatprep.subr.bf16.mxu0 0
    %1994 = vmatpush1.bf16.msra.mxu0 0
    %1995 = vmatprep.mubr.bf16.mxu0 0
    %1996 = vmatmul.mubr.bf16.gmra.mrb[0].mxu0 %v1958
    %v1997 = vpop.f32.mrb[0].mxu0
    %v1998 = vadd.f32 0.0, %v1997
    %v1999 = vpop.f32.mrb[0].mxu0
    %v2000 = vpop.f32.mrb[0].mxu0
    %v2001 = vpop.f32.mrb[0].mxu0
    %2002 = vdwg.mxu0
    %v2004 = vsel %vm1246, %v1859, 0
    %v2007 = vsel %vm1867, %v1233, 0
    %2009 = vmatprep.subr.bf16.mxu0 0
    %2010 = vmatpush1.bf16.msra.mxu0 %v2007
    %2011 = vmatprep.subr.bf16.mxu0 0
    %2012 = vmatpush1.bf16.msra.mxu0 0
    %2013 = vmatprep.subr.bf16.mxu0 0
    %2014 = vmatpush1.bf16.msra.mxu0 0
    %2015 = vmatprep.subr.bf16.mxu0 0
    %2016 = vmatpush1.bf16.msra.mxu0 0
    %2017 = vmatprep.subr.bf16.mxu0 0
    %2018 = vmatpush1.bf16.msra.mxu0 0
    %2019 = vmatprep.subr.bf16.mxu0 0
    %2020 = vmatpush1.bf16.msra.mxu0 0
    %2021 = vmatprep.subr.bf16.mxu0 0
    %2022 = vmatpush1.bf16.msra.mxu0 0
    %2023 = vmatprep.subr.bf16.mxu0 0
    %2024 = vmatpush1.bf16.msra.mxu0 0
    %2025 = vmatprep.subr.bf16.mxu0 0
    %2026 = vmatpush1.bf16.msra.mxu0 0
    %2027 = vmatprep.subr.bf16.mxu0 0
    %2028 = vmatpush1.bf16.msra.mxu0 0
    %2029 = vmatprep.subr.bf16.mxu0 0
    %2030 = vmatpush1.bf16.msra.mxu0 0
    %2031 = vmatprep.subr.bf16.mxu0 0
    %2032 = vmatpush1.bf16.msra.mxu0 0
    %2033 = vmatprep.subr.bf16.mxu0 0
    %2034 = vmatpush1.bf16.msra.mxu0 0
    %2035 = vmatprep.subr.bf16.mxu0 0
    %2036 = vmatpush1.bf16.msra.mxu0 0
    %2037 = vmatprep.subr.bf16.mxu0 0
    %2038 = vmatpush1.bf16.msra.mxu0 0
    %2039 = vmatprep.subr.bf16.mxu0 0
    %2040 = vmatpush1.bf16.msra.mxu0 0
    %2041 = vmatprep.mubr.bf16.mxu0 0
    %2042 = vmatmul.mubr.bf16.gmra.mrb[0].mxu0 %v2004
    %v2043 = vpop.f32.mrb[0].mxu0
    %v2044 = vadd.f32 0.0, %v2043
    %v2045 = vpop.f32.mrb[0].mxu0
    %v2046 = vpop.f32.mrb[0].mxu0
    %v2047 = vpop.f32.mrb[0].mxu0
    %2048 = vdwg.mxu0
    %v2050 = vsel %vm1246, %v1860, 0
    %v2053 = vsel %vm1867, %v1234, 0
    %2055 = vmatprep.subr.bf16.mxu0 0
    %2056 = vmatpush1.bf16.msra.mxu0 %v2053
    %2057 = vmatprep.subr.bf16.mxu0 0
    %2058 = vmatpush1.bf16.msra.mxu0 0
    %2059 = vmatprep.subr.bf16.mxu0 0
    %2060 = vmatpush1.bf16.msra.mxu0 0
    %2061 = vmatprep.subr.bf16.mxu0 0
    %2062 = vmatpush1.bf16.msra.mxu0 0
    %2063 = vmatprep.subr.bf16.mxu0 0
    %2064 = vmatpush1.bf16.msra.mxu0 0
    %2065 = vmatprep.subr.bf16.mxu0 0
    %2066 = vmatpush1.bf16.msra.mxu0 0
    %2067 = vmatprep.subr.bf16.mxu0 0
    %2068 = vmatpush1.bf16.msra.mxu0 0
    %2069 = vmatprep.subr.bf16.mxu0 0
    %2070 = vmatpush1.bf16.msra.mxu0 0
    %2071 = vmatprep.subr.bf16.mxu0 0
    %2072 = vmatpush1.bf16.msra.mxu0 0
    %2073 = vmatprep.subr.bf16.mxu0 0
    %2074 = vmatpush1.bf16.msra.mxu0 0
    %2075 = vmatprep.subr.bf16.mxu0 0
    %2076 = vmatpush1.bf16.msra.mxu0 0
    %2077 = vmatprep.subr.bf16.mxu0 0
    %2078 = vmatpush1.bf16.msra.mxu0 0
    %2079 = vmatprep.subr.bf16.mxu0 0
    %2080 = vmatpush1.bf16.msra.mxu0 0
    %2081 = vmatprep.subr.bf16.mxu0 0
    %2082 = vmatpush1.bf16.msra.mxu0 0
    %2083 = vmatprep.subr.bf16.mxu0 0
    %2084 = vmatpush1.bf16.msra.mxu0 0
    %2085 = vmatprep.subr.bf16.mxu0 0
    %2086 = vmatpush1.bf16.msra.mxu0 0
    %2087 = vmatprep.mubr.bf16.mxu0 0
    %2088 = vmatmul.mubr.bf16.gmra.mrb[0].mxu0 %v2050
    %v2089 = vpop.f32.mrb[0].mxu0
    %v2090 = vadd.f32 0.0, %v2089
    %v2091 = vpop.f32.mrb[0].mxu0
    %v2092 = vpop.f32.mrb[0].mxu0
    %v2093 = vpop.f32.mrb[0].mxu0
    %2094 = vdwg.mxu0
    %v2096 = vsel %vm1246, %v1861, 0
    %v2099 = vsel %vm1867, %v1235, 0
    %2101 = vmatprep.subr.bf16.mxu0 0
    %2102 = vmatpush1.bf16.msra.mxu0 %v2099
    %2103 = vmatprep.subr.bf16.mxu0 0
    %2104 = vmatpush1.bf16.msra.mxu0 0
    %2105 = vmatprep.subr.bf16.mxu0 0
    %2106 = vmatpush1.bf16.msra.mxu0 0
    %2107 = vmatprep.subr.bf16.mxu0 0
    %2108 = vmatpush1.bf16.msra.mxu0 0
    %2109 = vmatprep.subr.bf16.mxu0 0
    %2110 = vmatpush1.bf16.msra.mxu0 0
    %2111 = vmatprep.subr.bf16.mxu0 0
    %2112 = vmatpush1.bf16.msra.mxu0 0
    %2113 = vmatprep.subr.bf16.mxu0 0
    %2114 = vmatpush1.bf16.msra.mxu0 0
    %2115 = vmatprep.subr.bf16.mxu0 0
    %2116 = vmatpush1.bf16.msra.mxu0 0
    %2117 = vmatprep.subr.bf16.mxu0 0
    %2118 = vmatpush1.bf16.msra.mxu0 0
    %2119 = vmatprep.subr.bf16.mxu0 0
    %2120 = vmatpush1.bf16.msra.mxu0 0
    %2121 = vmatprep.subr.bf16.mxu0 0
    %2122 = vmatpush1.bf16.msra.mxu0 0
    %2123 = vmatprep.subr.bf16.mxu0 0
    %2124 = vmatpush1.bf16.msra.mxu0 0
    %2125 = vmatprep.subr.bf16.mxu0 0
    %2126 = vmatpush1.bf16.msra.mxu0 0
    %2127 = vmatprep.subr.bf16.mxu0 0
    %2128 = vmatpush1.bf16.msra.mxu0 0
    %2129 = vmatprep.subr.bf16.mxu0 0
    %2130 = vmatpush1.bf16.msra.mxu0 0
    %2131 = vmatprep.subr.bf16.mxu0 0
    %2132 = vmatpush1.bf16.msra.mxu0 0
    %2133 = vmatprep.mubr.bf16.mxu0 0
    %2134 = vmatmul.mubr.bf16.gmra.mrb[0].mxu0 %v2096
    %v2135 = vpop.f32.mrb[0].mxu0
    %v2136 = vadd.f32 0.0, %v2135
    %v2137 = vpop.f32.mrb[0].mxu0
    %v2138 = vpop.f32.mrb[0].mxu0
    %v2139 = vpop.f32.mrb[0].mxu0
    %2140 = vdwg.mxu0
    %v2142 = vsel %vm1246, %v1862, 0
    %v2145 = vsel %vm1867, %v1236, 0
    %2147 = vmatprep.subr.bf16.mxu0 0
    %2148 = vmatpush1.bf16.msra.mxu0 %v2145
    %2149 = vmatprep.subr.bf16.mxu0 0
    %2150 = vmatpush1.bf16.msra.mxu0 0
    %2151 = vmatprep.subr.bf16.mxu0 0
    %2152 = vmatpush1.bf16.msra.mxu0 0
    %2153 = vmatprep.subr.bf16.mxu0 0
    %2154 = vmatpush1.bf16.msra.mxu0 0
    %2155 = vmatprep.subr.bf16.mxu0 0
    %2156 = vmatpush1.bf16.msra.mxu0 0
    %2157 = vmatprep.subr.bf16.mxu0 0
    %2158 = vmatpush1.bf16.msra.mxu0 0
    %2159 = vmatprep.subr.bf16.mxu0 0
    %2160 = vmatpush1.bf16.msra.mxu0 0
    %2161 = vmatprep.subr.bf16.mxu0 0
    %2162 = vmatpush1.bf16.msra.mxu0 0
    %2163 = vmatprep.subr.bf16.mxu0 0
    %2164 = vmatpush1.bf16.msra.mxu0 0
    %2165 = vmatprep.subr.bf16.mxu0 0
    %2166 = vmatpush1.bf16.msra.mxu0 0
    %2167 = vmatprep.subr.bf16.mxu0 0
    %2168 = vmatpush1.bf16.msra.mxu0 0
    %2169 = vmatprep.subr.bf16.mxu0 0
    %2170 = vmatpush1.bf16.msra.mxu0 0
    %2171 = vmatprep.subr.bf16.mxu0 0
    %2172 = vmatpush1.bf16.msra.mxu0 0
    %2173 = vmatprep.subr.bf16.mxu0 0
    %2174 = vmatpush1.bf16.msra.mxu0 0
    %2175 = vmatprep.subr.bf16.mxu0 0
    %2176 = vmatpush1.bf16.msra.mxu0 0
    %2177 = vmatprep.subr.bf16.mxu0 0
    %2178 = vmatpush1.bf16.msra.mxu0 0
    %2179 = vmatprep.mubr.bf16.mxu0 0
    %2180 = vmatmul.mubr.bf16.gmra.mrb[0].mxu0 %v2142
    %v2181 = vpop.f32.mrb[0].mxu0
    %v2182 = vadd.f32 0.0, %v2181
    %v2183 = vpop.f32.mrb[0].mxu0
    %v2184 = vpop.f32.mrb[0].mxu0
    %v2185 = vpop.f32.mrb[0].mxu0
    %2186 = vdwg.mxu0
    %v2188 = vsel %vm1246, %v1863, 0
    %v2191 = vsel %vm1867, %v1237, 0
    %2193 = vmatprep.subr.bf16.mxu0 0
    %2194 = vmatpush1.bf16.msra.mxu0 %v2191
    %2195 = vmatprep.subr.bf16.mxu0 0
    %2196 = vmatpush1.bf16.msra.mxu0 0
    %2197 = vmatprep.subr.bf16.mxu0 0
    %2198 = vmatpush1.bf16.msra.mxu0 0
    %2199 = vmatprep.subr.bf16.mxu0 0
    %2200 = vmatpush1.bf16.msra.mxu0 0
    %2201 = vmatprep.subr.bf16.mxu0 0
    %2202 = vmatpush1.bf16.msra.mxu0 0
    %2203 = vmatprep.subr.bf16.mxu0 0
    %2204 = vmatpush1.bf16.msra.mxu0 0
    %2205 = vmatprep.subr.bf16.mxu0 0
    %2206 = vmatpush1.bf16.msra.mxu0 0
    %2207 = vmatprep.subr.bf16.mxu0 0
    %2208 = vmatpush1.bf16.msra.mxu0 0
    %2209 = vmatprep.subr.bf16.mxu0 0
    %2210 = vmatpush1.bf16.msra.mxu0 0
    %2211 = vmatprep.subr.bf16.mxu0 0
    %2212 = vmatpush1.bf16.msra.mxu0 0
    %2213 = vmatprep.subr.bf16.mxu0 0
    %2214 = vmatpush1.bf16.msra.mxu0 0
    %2215 = vmatprep.subr.bf16.mxu0 0
    %2216 = vmatpush1.bf16.msra.mxu0 0
    %2217 = vmatprep.subr.bf16.mxu0 0
    %2218 = vmatpush1.bf16.msra.mxu0 0
    %2219 = vmatprep.subr.bf16.mxu0 0
    %2220 = vmatpush1.bf16.msra.mxu0 0
    %2221 = vmatprep.subr.bf16.mxu0 0
    %2222 = vmatpush1.bf16.msra.mxu0 0
    %2223 = vmatprep.subr.bf16.mxu0 0
    %2224 = vmatpush1.bf16.msra.mxu0 0
    %2225 = vmatprep.mubr.bf16.mxu0 0
    %2226 = vmatmul.mubr.bf16.gmra.mrb[0].mxu0 %v2188
    %v2227 = vpop.f32.mrb[0].mxu0
    %v2228 = vadd.f32 0.0, %v2227
    %v2229 = vpop.f32.mrb[0].mxu0
    %v2230 = vpop.f32.mrb[0].mxu0
    %v2231 = vpop.f32.mrb[0].mxu0
    %2232 = vdwg.mxu0
    %v2233 = vadd.f32 %v1848, %v1906
    %v2234 = vadd.f32 %v1849, %v1952
    %v2235 = vadd.f32 %v1850, %v1998
    %v2236 = vadd.f32 %v1851, %v2044
    %v2237 = vadd.f32 %v1852, %v2090
    %v2238 = vadd.f32 %v1853, %v2136
    %v2239 = vadd.f32 %v1854, %v2182
    %v2240 = vadd.f32 %v1855, %v2228
    %2241 = vst.msk [vmem:[#allocation5] sm:$0xff] %vm1246, %v2233
    %2242 = vst.msk [vmem:[#allocation5 + $0x8] sm:$0xff] %vm1246, %v2234
    %2243 = vst.msk [vmem:[#allocation5 + $0x10] sm:$0xff] %vm1246, %v2235
    %2244 = vst.msk [vmem:[#allocation5 + $0x18] sm:$0xff] %vm1246, %v2236
    %2245 = vst.msk [vmem:[#allocation5 + $0x20] sm:$0xff] %vm1246, %v2237
    %2246 = vst.msk [vmem:[#allocation5 + $0x28] sm:$0xff] %vm1246, %v2238
    %2247 = vst.msk [vmem:[#allocation5 + $0x30] sm:$0xff] %vm1246, %v2239
    %2248 = vst.msk [vmem:[#allocation5 + $0x38] sm:$0xff] %vm1246, %v2240
    %2249 = vst.msk [vmem:[#allocation3] sm:$0xff] %vm1791, %v1647
    %2250 = vst.msk [vmem:[#allocation3 + $0x8] sm:$0xff] %vm1791, %v1648
    %2251 = vst.msk [vmem:[#allocation3 + $0x10] sm:$0xff] %vm1791, %v1649
    %2252 = vst.msk [vmem:[#allocation3 + $0x18] sm:$0xff] %vm1791, %v1650
    %2253 = vst.msk [vmem:[#allocation3 + $0x20] sm:$0xff] %vm1791, %v1651
    %2254 = vst.msk [vmem:[#allocation3 + $0x28] sm:$0xff] %vm1791, %v1652
    %2255 = vst.msk [vmem:[#allocation3 + $0x30] sm:$0xff] %vm1791, %v1653
    %2256 = vst.msk [vmem:[#allocation3 + $0x38] sm:$0xff] %vm1791, %v1654
    // Predicated region
    $region54: #{tpu_custom_call.1} parent=1 // pred_check
      %p2257 = pneg %p99
    $region55: #{tpu_custom_call.1} parent=1 // pred_check_branch
      %2259 = sbr.rel (%p2257) target = $region57
    $region56: #{tpu_custom_call.1} parent=1 // pred_region
      %v2260 = vld [vmem:[#allocation4] sm:$0xff]
      %v2261 = vld [vmem:[#allocation4 + $0x8] sm:$0xff]
      %v2262 = vld [vmem:[#allocation4 + $0x10] sm:$0xff]
      %v2263 = vld [vmem:[#allocation4 + $0x18] sm:$0xff]
      %v2264 = vld [vmem:[#allocation4 + $0x20] sm:$0xff]
      %v2265 = vld [vmem:[#allocation4 + $0x28] sm:$0xff]
      %v2266 = vld [vmem:[#allocation4 + $0x30] sm:$0xff]
      %v2267 = vld [vmem:[#allocation4 + $0x38] sm:$0xff]
      %v2268 = vrcp.pop %v2260
      %v2269 = vmul.f32 1.0, %v2268
      %v2270 = vrcp.pop %v2261
      %v2271 = vmul.f32 1.0, %v2270
      %v2272 = vrcp.pop %v2262
      %v2273 = vmul.f32 1.0, %v2272
      %v2274 = vrcp.pop %v2263
      %v2275 = vmul.f32 1.0, %v2274
      %v2276 = vrcp.pop %v2264
      %v2277 = vmul.f32 1.0, %v2276
      %v2278 = vrcp.pop %v2265
      %v2279 = vmul.f32 1.0, %v2278
      %v2280 = vrcp.pop %v2266
      %v2281 = vmul.f32 1.0, %v2280
      %v2282 = vrcp.pop %v2267
      %v2283 = vmul.f32 1.0, %v2282
      %v2284 = vld [vmem:[#allocation5] sm:$0xff]
      %v2285 = vld [vmem:[#allocation5 + $0x8] sm:$0xff]
      %v2286 = vld [vmem:[#allocation5 + $0x10] sm:$0xff]
      %v2287 = vld [vmem:[#allocation5 + $0x18] sm:$0xff]
      %v2288 = vld [vmem:[#allocation5 + $0x20] sm:$0xff]
      %v2289 = vld [vmem:[#allocation5 + $0x28] sm:$0xff]
      %v2290 = vld [vmem:[#allocation5 + $0x30] sm:$0xff]
      %v2291 = vld [vmem:[#allocation5 + $0x38] sm:$0xff]
      %2293 = vset.pattern.permute.xlu0 0
      %2294 = vperm.xlu0 %2293, %v2269
      %v2295 = vpop.permute.xlu0 %2294
      %2298 = vset.pattern.permute.xlu0 0
      %2299 = vperm.xlu0 %2298, %v2271
      %v2300 = vpop.permute.xlu0 %2299
      %2303 = vset.pattern.permute.xlu0 0
      %2304 = vperm.xlu0 %2303, %v2273
      %v2305 = vpop.permute.xlu0 %2304
      %2308 = vset.pattern.permute.xlu0 0
      %2309 = vperm.xlu0 %2308, %v2275
      %v2310 = vpop.permute.xlu0 %2309
      %2313 = vset.pattern.permute.xlu0 0
      %2314 = vperm.xlu0 %2313, %v2277
      %v2315 = vpop.permute.xlu0 %2314
      %2318 = vset.pattern.permute.xlu0 0
      %2319 = vperm.xlu0 %2318, %v2279
      %v2320 = vpop.permute.xlu0 %2319
      %2323 = vset.pattern.permute.xlu0 0
      %2324 = vperm.xlu0 %2323, %v2281
      %v2325 = vpop.permute.xlu0 %2324
      %2328 = vset.pattern.permute.xlu0 0
      %2329 = vperm.xlu0 %2328, %v2283
      %v2330 = vpop.permute.xlu0 %2329
      %v2332 = vmul.f32 %v2284, %v2295
      %v2333 = vmul.f32 %v2285, %v2300
      %v2334 = vmul.f32 %v2286, %v2305
      %v2335 = vmul.f32 %v2287, %v2310
      %v2336 = vmul.f32 %v2288, %v2315
      %v2337 = vmul.f32 %v2289, %v2320
      %v2338 = vmul.f32 %v2290, %v2325
      %v2339 = vmul.f32 %v2291, %v2330
      %v2340 = vpack.c.bf16 %v2332, %v2332
      %v2342 = vunpack.c.l.s4 1983009808
      %v2343 = vunpack.c.0.s8 %v2342
      %v2344 = vlaneseq
      %v2345 = vshrl.u32 %v2344, 7
      %v2346 = vsub.s32 %v2343, %v2345
      %v2347 = vrot.slane %v2340, %v2346
      %v2348 = vpack.c.bf16 %v2336, %v2336
      %v2350 = vunpack.c.l.s4 1983009808
      %v2351 = vunpack.c.0.s8 %v2350
      %v2352 = vlaneseq
      %v2353 = vshrl.u32 %v2352, 7
      %v2354 = vsub.s32 %v2351, %v2353
      %v2355 = vrot.slane %v2348, %v2354
      %v2356 = vcombine.low %v2347, %v2355
      %v2357 = vcombine.high %v2347, %v2355
      %v2359 = vunpack.c.l.s4 1934713408
      %v2360 = vunpack.c.0.s8 %v2359
      %v2361 = vlaneseq
      %v2362 = vshrl.u32 %v2361, 7
      %v2363 = vsub.s32 %v2360, %v2362
      %v2364 = vrot.slane %v2356, %v2363
      %v2366 = vunpack.c.l.s4 1934713408
      %v2367 = vunpack.c.0.s8 %v2366
      %v2368 = vlaneseq
      %v2369 = vshrl.u32 %v2368, 7
      %v2370 = vsub.s32 %v2367, %v2369
      %v2371 = vrot.slane %v2357, %v2370
      %v2372 = vcombine.high %v2364, 0
      %v2373 = vcombine.high %v2371, 0
      %v2374 = vpack.c.bf16 %v2334, %v2334
      %v2376 = vunpack.c.l.s4 1983009808
      %v2377 = vunpack.c.0.s8 %v2376
      %v2378 = vlaneseq
      %v2379 = vshrl.u32 %v2378, 7
      %v2380 = vsub.s32 %v2377, %v2379
      %v2381 = vrot.slane %v2374, %v2380
      %v2382 = vpack.c.bf16 %v2338, %v2338
      %v2384 = vunpack.c.l.s4 1983009808
      %v2385 = vunpack.c.0.s8 %v2384
      %v2386 = vlaneseq
      %v2387 = vshrl.u32 %v2386, 7
      %v2388 = vsub.s32 %v2385, %v2387
      %v2389 = vrot.slane %v2382, %v2388
      %v2390 = vcombine.low %v2381, %v2389
      %v2391 = vcombine.high %v2381, %v2389
      %v2393 = vunpack.c.l.s4 1934713408
      %v2394 = vunpack.c.0.s8 %v2393
      %v2395 = vlaneseq
      %v2396 = vshrl.u32 %v2395, 7
      %v2397 = vsub.s32 %v2394, %v2396
      %v2398 = vrot.slane %v2390, %v2397
      %v2400 = vunpack.c.l.s4 1934713408
      %v2401 = vunpack.c.0.s8 %v2400
      %v2402 = vlaneseq
      %v2403 = vshrl.u32 %v2402, 7
      %v2404 = vsub.s32 %v2401, %v2403
      %v2405 = vrot.slane %v2391, %v2404
      %v2406 = vcombine.high %v2398, 0
      %v2407 = vcombine.high %v2405, 0
      %v2410 = vpack.i.b16 %v2398, %v2364
      %v2412 = vshrl.u32 %v2364, 16
      %v2413 = vshrl.u32 %v2398, 16
      %v2414 = vpack.i.b16 %v2413, %v2412
      %v2418 = vpack.i.b16 %v2406, %v2372
      %v2420 = vshrl.u32 %v2372, 16
      %v2421 = vshrl.u32 %v2406, 16
      %v2422 = vpack.i.b16 %v2421, %v2420
      %v2426 = vpack.i.b16 %v2405, %v2371
      %v2428 = vshrl.u32 %v2371, 16
      %v2429 = vshrl.u32 %v2405, 16
      %v2430 = vpack.i.b16 %v2429, %v2428
      %v2434 = vpack.i.b16 %v2407, %v2373
      %v2436 = vshrl.u32 %v2373, 16
      %v2437 = vshrl.u32 %v2407, 16
      %v2438 = vpack.i.b16 %v2437, %v2436
      %v2440 = vcombine.low %v2410, %v2426
      %v2442 = vunpack.c.l.s4 1983009808
      %v2443 = vunpack.c.0.s8 %v2442
      %v2444 = vlaneseq
      %v2445 = vshrl.u32 %v2444, 7
      %v2446 = vsub.s32 %v2443, %v2445
      %v2447 = vrot.slane %v2440, %v2446
      %v2448 = vcombine.low %v2418, %v2434
      %v2450 = vunpack.c.l.s4 1983009808
      %v2451 = vunpack.c.0.s8 %v2450
      %v2452 = vlaneseq
      %v2453 = vshrl.u32 %v2452, 7
      %v2454 = vsub.s32 %v2451, %v2453
      %v2455 = vrot.slane %v2448, %v2454
      %v2456 = vcombine.low %v2447, %v2455
      %v2458 = vunpack.c.l.s4 1934713408
      %v2459 = vunpack.c.0.s8 %v2458
      %v2460 = vlaneseq
      %v2461 = vshrl.u32 %v2460, 7
      %v2462 = vsub.s32 %v2459, %v2461
      %v2463 = vrot.slane %v2456, %v2462
      %v2464 = vcombine.high %v2463, 0
      %v2465 = vcombine.low %v2414, %v2430
      %v2467 = vunpack.c.l.s4 1983009808
      %v2468 = vunpack.c.0.s8 %v2467
      %v2469 = vlaneseq
      %v2470 = vshrl.u32 %v2469, 7
      %v2471 = vsub.s32 %v2468, %v2470
      %v2472 = vrot.slane %v2465, %v2471
      %v2473 = vcombine.low %v2422, %v2438
      %v2475 = vunpack.c.l.s4 1983009808
      %v2476 = vunpack.c.0.s8 %v2475
      %v2477 = vlaneseq
      %v2478 = vshrl.u32 %v2477, 7
      %v2479 = vsub.s32 %v2476, %v2478
      %v2480 = vrot.slane %v2473, %v2479
      %v2481 = vcombine.low %v2472, %v2480
      %v2483 = vunpack.c.l.s4 1934713408
      %v2484 = vunpack.c.0.s8 %v2483
      %v2485 = vlaneseq
      %v2486 = vshrl.u32 %v2485, 7
      %v2487 = vsub.s32 %v2484, %v2486
      %v2488 = vrot.slane %v2481, %v2487
      %v2489 = vcombine.high %v2488, 0
      %v2492 = vpack.i.b16 %v2488, %v2463
      %v2493 = vshrl.u32 %v2463, 16
      %v2494 = vshrl.u32 %v2488, 16
      %v2495 = vpack.i.b16 %v2494, %v2493
      %v2498 = vpack.i.b16 %v2489, %v2464
      %v2499 = vshrl.u32 %v2464, 16
      %v2500 = vshrl.u32 %v2489, 16
      %v2501 = vpack.i.b16 %v2500, %v2499
      %2502 = vrot.lane.b32.xlu0 %v2495, 8
      %v2503 = vpop.permute.xlu0 %2502
      %2504 = vrot.lane.b32.xlu0 %v2498, 16
      %v2505 = vpop.permute.xlu0 %2504
      %2506 = vrot.lane.b32.xlu0 %v2501, 24
      %v2507 = vpop.permute.xlu0 %2506
      %v2510 = vsel %vm1246, %v2492, %v2503
      %vm2511 = vcmask 130048
      %v2513 = vsel %vm2511, %v2510, %v2505
      %vm2514 = vcmask 195584
      %v2516 = vsel %vm2514, %v2513, %v2507
      %v2517 = vpack.c.bf16 %v2333, %v2333
      %v2519 = vunpack.c.l.s4 1983009808
      %v2520 = vunpack.c.0.s8 %v2519
      %v2521 = vlaneseq
      %v2522 = vshrl.u32 %v2521, 7
      %v2523 = vsub.s32 %v2520, %v2522
      %v2524 = vrot.slane %v2517, %v2523
      %v2525 = vpack.c.bf16 %v2337, %v2337
      %v2527 = vunpack.c.l.s4 1983009808
      %v2528 = vunpack.c.0.s8 %v2527
      %v2529 = vlaneseq
      %v2530 = vshrl.u32 %v2529, 7
      %v2531 = vsub.s32 %v2528, %v2530
      %v2532 = vrot.slane %v2525, %v2531
      %v2533 = vcombine.low %v2524, %v2532
      %v2534 = vcombine.high %v2524, %v2532
      %v2536 = vunpack.c.l.s4 1934713408
      %v2537 = vunpack.c.0.s8 %v2536
      %v2538 = vlaneseq
      %v2539 = vshrl.u32 %v2538, 7
      %v2540 = vsub.s32 %v2537, %v2539
      %v2541 = vrot.slane %v2533, %v2540
      %v2543 = vunpack.c.l.s4 1934713408
      %v2544 = vunpack.c.0.s8 %v2543
      %v2545 = vlaneseq
      %v2546 = vshrl.u32 %v2545, 7
      %v2547 = vsub.s32 %v2544, %v2546
      %v2548 = vrot.slane %v2534, %v2547
      %v2549 = vcombine.high %v2541, 0
      %v2550 = vcombine.high %v2548, 0
      %v2551 = vpack.c.bf16 %v2335, %v2335
      %v2553 = vunpack.c.l.s4 1983009808
      %v2554 = vunpack.c.0.s8 %v2553
      %v2555 = vlaneseq
      %v2556 = vshrl.u32 %v2555, 7
      %v2557 = vsub.s32 %v2554, %v2556
      %v2558 = vrot.slane %v2551, %v2557
      %v2559 = vpack.c.bf16 %v2339, %v2339
      %v2561 = vunpack.c.l.s4 1983009808
      %v2562 = vunpack.c.0.s8 %v2561
      %v2563 = vlaneseq
      %v2564 = vshrl.u32 %v2563, 7
      %v2565 = vsub.s32 %v2562, %v2564
      %v2566 = vrot.slane %v2559, %v2565
      %v2567 = vcombine.low %v2558, %v2566
      %v2568 = vcombine.high %v2558, %v2566
      %v2570 = vunpack.c.l.s4 1934713408
      %v2571 = vunpack.c.0.s8 %v2570
      %v2572 = vlaneseq
      %v2573 = vshrl.u32 %v2572, 7
      %v2574 = vsub.s32 %v2571, %v2573
      %v2575 = vrot.slane %v2567, %v2574
      %v2577 = vunpack.c.l.s4 1934713408
      %v2578 = vunpack.c.0.s8 %v2577
      %v2579 = vlaneseq
      %v2580 = vshrl.u32 %v2579, 7
      %v2581 = vsub.s32 %v2578, %v2580
      %v2582 = vrot.slane %v2568, %v2581
      %v2583 = vcombine.high %v2575, 0
      %v2584 = vcombine.high %v2582, 0
      %v2587 = vpack.i.b16 %v2575, %v2541
      %v2589 = vshrl.u32 %v2541, 16
      %v2590 = vshrl.u32 %v2575, 16
      %v2591 = vpack.i.b16 %v2590, %v2589
      %v2595 = vpack.i.b16 %v2583, %v2549
      %v2597 = vshrl.u32 %v2549, 16
      %v2598 = vshrl.u32 %v2583, 16
      %v2599 = vpack.i.b16 %v2598, %v2597
      %v2603 = vpack.i.b16 %v2582, %v2548
      %v2605 = vshrl.u32 %v2548, 16
      %v2606 = vshrl.u32 %v2582, 16
      %v2607 = vpack.i.b16 %v2606, %v2605
      %v2611 = vpack.i.b16 %v2584, %v2550
      %v2613 = vshrl.u32 %v2550, 16
      %v2614 = vshrl.u32 %v2584, 16
      %v2615 = vpack.i.b16 %v2614, %v2613
      %v2617 = vcombine.low %v2587, %v2603
      %v2619 = vunpack.c.l.s4 1983009808
      %v2620 = vunpack.c.0.s8 %v2619
      %v2621 = vlaneseq
      %v2622 = vshrl.u32 %v2621, 7
      %v2623 = vsub.s32 %v2620, %v2622
      %v2624 = vrot.slane %v2617, %v2623
      %v2625 = vcombine.low %v2595, %v2611
      %v2627 = vunpack.c.l.s4 1983009808
      %v2628 = vunpack.c.0.s8 %v2627
      %v2629 = vlaneseq
      %v2630 = vshrl.u32 %v2629, 7
      %v2631 = vsub.s32 %v2628, %v2630
      %v2632 = vrot.slane %v2625, %v2631
      %v2633 = vcombine.low %v2624, %v2632
      %v2635 = vunpack.c.l.s4 1934713408
      %v2636 = vunpack.c.0.s8 %v2635
      %v2637 = vlaneseq
      %v2638 = vshrl.u32 %v2637, 7
      %v2639 = vsub.s32 %v2636, %v2638
      %v2640 = vrot.slane %v2633, %v2639
      %v2641 = vcombine.high %v2640, 0
      %v2642 = vcombine.low %v2591, %v2607
      %v2644 = vunpack.c.l.s4 1983009808
      %v2645 = vunpack.c.0.s8 %v2644
      %v2646 = vlaneseq
      %v2647 = vshrl.u32 %v2646, 7
      %v2648 = vsub.s32 %v2645, %v2647
      %v2649 = vrot.slane %v2642, %v2648
      %v2650 = vcombine.low %v2599, %v2615
      %v2652 = vunpack.c.l.s4 1983009808
      %v2653 = vunpack.c.0.s8 %v2652
      %v2654 = vlaneseq
      %v2655 = vshrl.u32 %v2654, 7
      %v2656 = vsub.s32 %v2653, %v2655
      %v2657 = vrot.slane %v2650, %v2656
      %v2658 = vcombine.low %v2649, %v2657
      %v2660 = vunpack.c.l.s4 1934713408
      %v2661 = vunpack.c.0.s8 %v2660
      %v2662 = vlaneseq
      %v2663 = vshrl.u32 %v2662, 7
      %v2664 = vsub.s32 %v2661, %v2663
      %v2665 = vrot.slane %v2658, %v2664
      %v2666 = vcombine.high %v2665, 0
      %v2669 = vpack.i.b16 %v2665, %v2640
      %v2670 = vshrl.u32 %v2640, 16
      %v2671 = vshrl.u32 %v2665, 16
      %v2672 = vpack.i.b16 %v2671, %v2670
      %v2675 = vpack.i.b16 %v2666, %v2641
      %v2676 = vshrl.u32 %v2641, 16
      %v2677 = vshrl.u32 %v2666, 16
      %v2678 = vpack.i.b16 %v2677, %v2676
      %2679 = vrot.lane.b32.xlu0 %v2672, 8
      %v2680 = vpop.permute.xlu0 %2679
      %2681 = vrot.lane.b32.xlu0 %v2675, 16
      %v2682 = vpop.permute.xlu0 %2681
      %2683 = vrot.lane.b32.xlu0 %v2678, 24
      %v2684 = vpop.permute.xlu0 %2683
      %v2687 = vsel %vm1246, %v2669, %v2680
      %v2689 = vsel %vm2511, %v2687, %v2682
      %v2691 = vsel %vm2514, %v2689, %v2684
      %v2693 = vrot.slane %v2691, 4
      %v2695 = vsel %vm1867, %v2516, %v2693
      %v2696 = vld [vmem:[%s5] sm:$0xf]
      %v2697 = vld [vmem:[%s5 + $0x4] sm:$0xf]
      %v2698 = vld [vmem:[%s5 + $0x8] sm:$0xf]
      %v2699 = vld [vmem:[%s5 + $0xc] sm:$0xf]
      %v2700 = vld [vmem:[%s6] sm:$0x1]
      %v2702 = vlaneseq
      %v2703 = vshrl.u32 %v2702, 7
      %v2704 = vsub.s32 0, %v2703
      %v2705 = vrot.slane %v2700, %v2704
      %v2711 = vunpack.c.l.b16 %v2696
      %v2712 = vunpack.c.l.b16 %v2697
      %v2713 = vunpack.c.l.b16 %v2698
      %v2714 = vunpack.c.l.b16 %v2699
      %v2715 = vpack.c.b16 %v2712, %v2711
      %v2716 = vpack.c.b16 %v2714, %v2713
      %v2719 = vsel %vm545, %v2695, 0
      %2721 = vmatprep.subr.bf16.mxu0 0
      %2722 = vmatpush1.bf16.msra.mxu0 %v2715
      %2723 = vmatprep.subr.bf16.mxu0 0
      %2724 = vmatpush1.bf16.msra.mxu0 %v2716
      %2725 = vmatprep.subr.bf16.mxu0 0
      %2726 = vmatpush1.bf16.msra.mxu0 0
      %2727 = vmatprep.subr.bf16.mxu0 0
      %2728 = vmatpush1.bf16.msra.mxu0 0
      %2729 = vmatprep.subr.bf16.mxu0 0
      %2730 = vmatpush1.bf16.msra.mxu0 0
      %2731 = vmatprep.subr.bf16.mxu0 0
      %2732 = vmatpush1.bf16.msra.mxu0 0
      %2733 = vmatprep.subr.bf16.mxu0 0
      %2734 = vmatpush1.bf16.msra.mxu0 0
      %2735 = vmatprep.subr.bf16.mxu0 0
      %2736 = vmatpush1.bf16.msra.mxu0 0
      %2737 = vmatprep.subr.bf16.mxu0 0
      %2738 = vmatpush1.bf16.msra.mxu0 0
      %2739 = vmatprep.subr.bf16.mxu0 0
      %2740 = vmatpush1.bf16.msra.mxu0 0
      %2741 = vmatprep.subr.bf16.mxu0 0
      %2742 = vmatpush1.bf16.msra.mxu0 0
      %2743 = vmatprep.subr.bf16.mxu0 0
      %2744 = vmatpush1.bf16.msra.mxu0 0
      %2745 = vmatprep.subr.bf16.mxu0 0
      %2746 = vmatpush1.bf16.msra.mxu0 0
      %2747 = vmatprep.subr.bf16.mxu0 0
      %2748 = vmatpush1.bf16.msra.mxu0 0
      %2749 = vmatprep.subr.bf16.mxu0 0
      %2750 = vmatpush1.bf16.msra.mxu0 0
      %2751 = vmatprep.subr.bf16.mxu0 0
      %2752 = vmatpush1.bf16.msra.mxu0 0
      %2753 = vmatprep.mubr.bf16.mxu0 0
      %2754 = vmatmul.mubr.bf16.gmra.mrb[0].mxu0 %v2719
      %v2755 = vpop.f32.mrb[0].mxu0
      %v2756 = vadd.f32 %v2705, %v2755
      %v2757 = vpop.f32.mrb[0].mxu0
      %v2758 = vpop.f32.mrb[0].mxu0
      %v2759 = vadd.f32 %v2705, %v2758
      %v2760 = vpop.f32.mrb[0].mxu0
      %2761 = vdwg.mxu0
      %v2762 = vpack.c.bf16 %v2756, %v2756
      %v2763 = vpack.c.bf16 %v2759, %v2759
      %vm2764 = vcmask 257024
      %2765 = vst.msk [vmem:[#allocation15] sm:$0xf] %vm2764, %v2762
      %2766 = vst.msk [vmem:[#allocation15 + $0x4] sm:$0xf] %vm2764, %v2763
      %v2767 = vmul.f32 %v1728, %v2295
      %v2768 = vmul.f32 %v1730, %v2300
      %v2769 = vmul.f32 %v1732, %v2305
      %v2770 = vmul.f32 %v1734, %v2310
      %v2771 = vmul.f32 %v1736, %v2315
      %v2772 = vmul.f32 %v1738, %v2320
      %v2773 = vmul.f32 %v1740, %v2325
      %v2774 = vmul.f32 %v1742, %v2330
      %v2775 = vsel %vm1246, %v2767, 0.0
      %v2776 = vsel %vm1246, %v2769, 0.0
      %v2777 = vadd.f32 %v2775, %v2776
      %v2778 = vsel %vm1246, %v2771, 0.0
      %v2779 = vadd.f32 %v2777, %v2778
      %v2780 = vsel %vm1246, %v2773, 0.0
      %v2781 = vadd.f32 %v2779, %v2780
      %v2782 = vsel %vm1246, %v2768, 0.0
      %v2783 = vsel %vm1246, %v2770, 0.0
      %v2784 = vadd.f32 %v2782, %v2783
      %v2785 = vsel %vm1246, %v2772, 0.0
      %v2786 = vadd.f32 %v2784, %v2785
      %v2787 = vsel %vm1246, %v2774, 0.0
      %v2788 = vadd.f32 %v2786, %v2787
      %v2789 = vmul.f32 %v2781, 0.25
      %v2790 = vmul.f32 %v2788, 0.25
      %v2791 = vpack.c.bf16 %v2789, %v2789
      %v2792 = vpack.c.bf16 %v2790, %v2790
      %vm2793 = vcmask 60416
      %2794 = vst.msk [vmem:[#allocation16] sm:$0xf] %vm2793, %v2791
      %2795 = vst.msk [vmem:[#allocation16 + $0x4] sm:$0xf] %vm2793, %v2792
    $region57: #{tpu_custom_call.1} parent=1 // pred_fallthru
      _
    // Predicated region
    $region58: #{tpu_custom_call.1} parent=1 // pred_check
      _
    $region59: #{tpu_custom_call.1} parent=1 // pred_check_branch
      %2797 = sbr.rel (0) target = $region61
    $region60: #{tpu_custom_call.1} parent=1 // pred_region
      %s2799 = ssub.s32 128, 128
      %2800 = vsyncadd [#allocation8], %s2799
      %s2801 = sshll.u32 [#allocation15], 4
      %s2802 = int_to_ptr.vmem [resolvable:$true] %s2801
      %2807 = dma.vmem_to_hbm [thread:$0]  %s2802, 128, %s7, [#allocation8], 64, 64, 4
    $region61: #{tpu_custom_call.1} parent=1 // pred_fallthru
      _
    // Predicated region
    $region62: #{tpu_custom_call.1} parent=1 // pred_check
      _
    $region63: #{tpu_custom_call.1} parent=1 // pred_check_branch
      %2809 = sbr.rel (0) target = $region65
    $region64: #{tpu_custom_call.1} parent=1 // pred_region
      %s2811 = ssub.s32 128, 128
      %2812 = vsyncadd [#allocation17], %s2811
      %s2813 = sshll.u32 [#allocation16], 4
      %s2814 = int_to_ptr.vmem [resolvable:$true] %s2813
      %2819 = dma.vmem_to_hbm [thread:$0]  %s2814, 128, %s8, [#allocation17], 64, 64, 4
    $region65: #{tpu_custom_call.1} parent=1 // pred_fallthru
      _
    // Predicated region
    $region66: #{tpu_custom_call.1} parent=1 // pred_check
      _
    $region67: #{tpu_custom_call.1} parent=1 // pred_check_branch
      %2821 = sbr.rel (0) target = $region69
    $region68: #{tpu_custom_call.1} parent=1 // pred_region
      %2822 = dma.done [#allocation8], 128
    $region69: #{tpu_custom_call.1} parent=1 // pred_fallthru
      _
    // Predicated region
    $region70: #{tpu_custom_call.1} parent=1 // pred_check
      _
    $region71: #{tpu_custom_call.1} parent=1 // pred_check_branch
      %2824 = sbr.rel (0) target = $region73
    $region72: #{tpu_custom_call.1} parent=1 // pred_region
      %2825 = dma.done [#allocation17], 128
    $region73: #{tpu_custom_call.1} parent=1 // pred_fallthru
      _
    %2826 = vsyncpa [#allocation7], 1
    %2827 = vsyncpa [#allocation10], 1
    %2828 = vsyncpa [#allocation13], 1
    %2829 = vsyncpa [#allocation8], 1
    %2830 = vsyncpa [#allocation17], 1

</llo_original>
